<compile_context>
chip_gen: v7x
topology: tpu7x:2x2x1
jax: 0.10.0
libtpu: 0.0.40
codegen_flags: <defaults>
</compile_context>

<pallas_src>
import jax
import jax.numpy as jnp
import numpy as np
from jax import lax
from jax.experimental import pallas as pl
from jax.experimental.pallas import tpu as pltpu


def make_attention_kernel(num_heads: int, head_dim: int):
    H, hd = num_heads, head_dim

    def kernel(x_ref, wqkv_ref, wproj_ref, bias_ref, o_ref):
        # x block: (1, N, C); weights are full 2-D lane-dense bf16 blocks.
        N = x_ref.shape[1]
        C = x_ref.shape[2]
        f32 = jnp.float32
        bf16 = jnp.bfloat16

        x = x_ref[0].astype(bf16)                                    # (N, C)

        # --- fused lane-dense QKV projection: one (N,C)@(C,3C) MXU pass -----
        # (softmax scale is pre-folded into the q columns of w_qkv host-side)
        qkv = jnp.dot(x, wqkv_ref[...],
                      preferred_element_type=f32).astype(bf16)       # (N, 3C)

        # --- head split: static lane slices stacked on a leading head axis --
        def split_heads(col0):
            return jnp.stack(
                [qkv[:, col0 + h * hd: col0 + (h + 1) * hd] for h in range(H)],
                axis=0)                                              # (H, N, hd)

        q = split_heads(0)          # already scaled by hd**-0.5 via the weight
        k = split_heads(C)
        v = split_heads(2 * C)

        # --- scores: batch over heads, contract head_dim (no k.T built) -----
        s = lax.dot_general(q, k, (((2,), (2,)), ((0,), (0,))),
                            preferred_element_type=f32)              # (H, N, N)

        # --- numerically-stable softmax over the key axis (f32) -------------
        s = s - jnp.max(s, axis=-1, keepdims=True)
        p = jnp.exp(s)
        p = p * pl.reciprocal(jnp.sum(p, axis=-1, keepdims=True),
                              approx=True)                           # EUP recip

        # --- attention-weighted values ---------------------------------------
        ctx = lax.dot_general(p.astype(bf16), v, (((2,), (1,)), ((0,), (0,))),
                              preferred_element_type=f32)            # (H, N, hd)

        # --- head concat (static relayout) + single fused output projection -
        ctx2d = jnp.concatenate([ctx[h] for h in range(H)], axis=-1)  # (N, C)
        out = jnp.dot(ctx2d.astype(bf16), wproj_ref[...],
                      preferred_element_type=f32) + bias_ref[...]     # (N, C) f32

        # --- lane-dense store: flatten (N, C) -> (1, N*C) --------------------
        # C < 128 would hit masked vst.msk; present a 256-lane slab instead.
        # Built with sublane row-slices + lane concat (ops known to lower).
        flat = jnp.concatenate([out[i:i + 1, :] for i in range(N)], axis=-1)
        o_ref[0] = flat.astype(o_ref.dtype)                           # (1, N*C)

    return kernel


def attention_pallas(x, w_qkv, w_proj, b_proj, num_heads: int):
    """x: (B, N, C); w_qkv: (C, 3C); w_proj: (C, C); b_proj: (1, C)."""
    B, N, C = x.shape
    H = num_heads
    hd = C // H
    scale = hd ** (-0.5)

    # --- host-side one-time weight prep: 2-D lane-dense bf16 blocks ----------
    # Fold the softmax scale into the q columns (exact for power-of-two scale).
    w_qkv_p = (w_qkv.at[:, :C].multiply(scale)).astype(jnp.bfloat16)   # (C, 3C)
    w_proj_p = w_proj.astype(jnp.bfloat16)                             # (C, C)
    b_p = b_proj.astype(jnp.float32)                                   # (1, C)

    kernel = make_attention_kernel(H, hd)

    out_flat = pl.pallas_call(
        kernel,
        out_shape=jax.ShapeDtypeStruct((B, 1, N * C), x.dtype),
        grid_spec=pltpu.PrefetchScalarGridSpec(
            num_scalar_prefetch=0,
            grid=(B,),                          # B=2 -> one step per v7x TC
            in_specs=[
                pl.BlockSpec((1, N, C), lambda b: (b, 0, 0)),      # x
                pl.BlockSpec((C, 3 * C), lambda b: (0, 0)),        # w_qkv (resident)
                pl.BlockSpec((C, C), lambda b: (0, 0)),            # w_proj (resident)
                pl.BlockSpec((1, C), lambda b: (0, 0)),            # b_proj
            ],
            out_specs=pl.BlockSpec((1, 1, N * C), lambda b: (b, 0, 0)),
        ),
        # Toy blocks fit the default scoped VMEM easily; set vmem_limit_bytes
        # explicitly when scaling N / C up (v7x has 64 MiB physical VMEM).
        compiler_params=pltpu.CompilerParams(
            dimension_semantics=("parallel",)),
    )(x, w_qkv_p, w_proj_p, b_p)

    return out_flat.reshape(B, N, C)            # free host-side view


def attention_reference(x, w_qkv, w_proj, b_proj, num_heads: int):
    """Pure-JAX reference mirroring the PyTorch forward exactly."""
    B, N, C = x.shape
    hd = C // num_heads
    scale = hd ** (-0.5)
    qkv = x @ w_qkv                                      # (B, N, 3C)
    qkv = qkv.reshape(B, N, 3, num_heads, hd).transpose(2, 0, 3, 1, 4)
    q, k, v = qkv[0], qkv[1], qkv[2]                     # (B, H, N, hd)
    attn = jnp.einsum("bhnd,bhmd->bhnm", q, k) * scale
    attn = jax.nn.softmax(attn, axis=-1)
    out = jnp.einsum("bhnm,bhmd->bhnd", attn, v)         # (B, H, N, hd)
    out = out.transpose(0, 2, 1, 3).reshape(B, N, C)
    return out @ w_proj + b_proj[0]


if __name__ == "__main__":
    # Small shapes consistent with the module: dim=32, num_heads=8, head_dim=4.
    B, N, C, H = 2, 8, 32, 8

    key = jax.random.PRNGKey(0)
    kx, kq, kp, kb = jax.random.split(key, 4)

    x = jax.random.normal(kx, (B, N, C), dtype=jnp.float32)
    # Deterministic synthetic parameters (no qkv bias, module default).
    w_qkv = jax.random.normal(kq, (C, 3 * C), dtype=jnp.float32) * 0.1
    w_proj = jax.random.normal(kp, (C, C), dtype=jnp.float32) * 0.1
    b_proj = jax.random.normal(kb, (1, C), dtype=jnp.float32) * 0.1

    out = attention_pallas(x, w_qkv, w_proj, b_proj, H)
    out = jax.block_until_ready(out)

    ref = attention_reference(x, w_qkv, w_proj, b_proj, H)
    # bf16 matmul operands + EUP approx reciprocal -> relaxed tolerance.
    np.testing.assert_allclose(np.asarray(out), np.asarray(ref),
                               rtol=2e-2, atol=2e-2)
    print("KERNEL_OK")
</pallas_src>

<mosaic_0001>
module attributes {stable_mosaic.version = 11 : i64} {
  func.func @kernel(%arg0: i32, %arg1: memref<1x8x32xf32, #tpu.memory_space<vmem>>, %arg2: memref<32x96xbf16, #tpu.memory_space<vmem>>, %arg3: memref<32x32xbf16, #tpu.memory_space<vmem>>, %arg4: memref<1x32xf32, #tpu.memory_space<vmem>>, %arg5: memref<1x1x256xf32, #tpu.memory_space<vmem>>) attributes {dimension_semantics = [#tpu.dimension_semantics<parallel>], iteration_bounds = array<i64: 2>, scalar_prefetch = 0 : i64, scratch_operands = 0 : i64, tpu.core_type = #tpu.core_type<tc>, window_params = [{transform_indices = @transform_0, window_bounds = array<i64: 1, 8, 32>}, {pipeline_mode = #tpu.pipeline_mode<synchronous>, transform_indices = @transform_1, window_bounds = array<i64: 32, 96>}, {pipeline_mode = #tpu.pipeline_mode<synchronous>, transform_indices = @transform_2, window_bounds = array<i64: 32, 32>}, {pipeline_mode = #tpu.pipeline_mode<synchronous>, transform_indices = @transform_3, window_bounds = array<i64: 1, 32>}, {transform_indices = @transform_4, window_bounds = array<i64: 1, 1, 256>}]} {
    %c0 = arith.constant 0 : index
    %c0_0 = arith.constant 0 : index
    %c0_1 = arith.constant 0 : index
    %0 = vector.load %arg1[%c0, %c0_0, %c0_1] : memref<1x8x32xf32, #tpu.memory_space<vmem>>, vector<1x8x32xf32>
    %1 = vector.shape_cast %0 : vector<1x8x32xf32> to vector<8x32xf32>
    %2 = arith.truncf %1 : vector<8x32xf32> to vector<8x32xbf16>
    %c0_2 = arith.constant 0 : index
    %c0_3 = arith.constant 0 : index
    %3 = vector.load %arg2[%c0_2, %c0_3] : memref<32x96xbf16, #tpu.memory_space<vmem>>, vector<32x96xbf16>
    %cst = arith.constant dense<0.000000e+00> : vector<8x96xf32>
    %4 = tpu.matmul %2, %3, %cst {dimension_numbers = #tpu.dot_dimension_numbers<[1], [0], [0], [1], [0, 0, 1, 1], [], []>} : vector<8x32xbf16>, vector<32x96xbf16>, vector<8x96xf32> -> vector<8x96xf32>
    %5 = arith.truncf %4 : vector<8x96xf32> to vector<8x96xbf16>
    %6 = vector.extract_strided_slice %5 {offsets = [0, 0], sizes = [8, 4], strides = [1, 1]} : vector<8x96xbf16> to vector<8x4xbf16>
    %7 = vector.extract_strided_slice %5 {offsets = [0, 4], sizes = [8, 4], strides = [1, 1]} : vector<8x96xbf16> to vector<8x4xbf16>
    %8 = vector.extract_strided_slice %5 {offsets = [0, 8], sizes = [8, 4], strides = [1, 1]} : vector<8x96xbf16> to vector<8x4xbf16>
    %9 = vector.extract_strided_slice %5 {offsets = [0, 12], sizes = [8, 4], strides = [1, 1]} : vector<8x96xbf16> to vector<8x4xbf16>
    %10 = vector.extract_strided_slice %5 {offsets = [0, 16], sizes = [8, 4], strides = [1, 1]} : vector<8x96xbf16> to vector<8x4xbf16>
    %11 = vector.extract_strided_slice %5 {offsets = [0, 20], sizes = [8, 4], strides = [1, 1]} : vector<8x96xbf16> to vector<8x4xbf16>
    %12 = vector.extract_strided_slice %5 {offsets = [0, 24], sizes = [8, 4], strides = [1, 1]} : vector<8x96xbf16> to vector<8x4xbf16>
    %13 = vector.extract_strided_slice %5 {offsets = [0, 28], sizes = [8, 4], strides = [1, 1]} : vector<8x96xbf16> to vector<8x4xbf16>
    %14 = vector.shape_cast %6 : vector<8x4xbf16> to vector<1x8x4xbf16>
    %15 = vector.shape_cast %7 : vector<8x4xbf16> to vector<1x8x4xbf16>
    %16 = vector.shape_cast %8 : vector<8x4xbf16> to vector<1x8x4xbf16>
    %17 = vector.shape_cast %9 : vector<8x4xbf16> to vector<1x8x4xbf16>
    %18 = vector.shape_cast %10 : vector<8x4xbf16> to vector<1x8x4xbf16>
    %19 = vector.shape_cast %11 : vector<8x4xbf16> to vector<1x8x4xbf16>
    %20 = vector.shape_cast %12 : vector<8x4xbf16> to vector<1x8x4xbf16>
    %21 = vector.shape_cast %13 : vector<8x4xbf16> to vector<1x8x4xbf16>
    %22 = tpu.concatenate %14, %15, %16, %17, %18, %19, %20, %21 in 0 : vector<1x8x4xbf16>, vector<1x8x4xbf16>, vector<1x8x4xbf16>, vector<1x8x4xbf16>, vector<1x8x4xbf16>, vector<1x8x4xbf16>, vector<1x8x4xbf16>, vector<1x8x4xbf16> -> vector<8x8x4xbf16>
    %23 = vector.extract_strided_slice %5 {offsets = [0, 32], sizes = [8, 4], strides = [1, 1]} : vector<8x96xbf16> to vector<8x4xbf16>
    %24 = vector.extract_strided_slice %5 {offsets = [0, 36], sizes = [8, 4], strides = [1, 1]} : vector<8x96xbf16> to vector<8x4xbf16>
    %25 = vector.extract_strided_slice %5 {offsets = [0, 40], sizes = [8, 4], strides = [1, 1]} : vector<8x96xbf16> to vector<8x4xbf16>
    %26 = vector.extract_strided_slice %5 {offsets = [0, 44], sizes = [8, 4], strides = [1, 1]} : vector<8x96xbf16> to vector<8x4xbf16>
    %27 = vector.extract_strided_slice %5 {offsets = [0, 48], sizes = [8, 4], strides = [1, 1]} : vector<8x96xbf16> to vector<8x4xbf16>
    %28 = vector.extract_strided_slice %5 {offsets = [0, 52], sizes = [8, 4], strides = [1, 1]} : vector<8x96xbf16> to vector<8x4xbf16>
    %29 = vector.extract_strided_slice %5 {offsets = [0, 56], sizes = [8, 4], strides = [1, 1]} : vector<8x96xbf16> to vector<8x4xbf16>
    %30 = vector.extract_strided_slice %5 {offsets = [0, 60], sizes = [8, 4], strides = [1, 1]} : vector<8x96xbf16> to vector<8x4xbf16>
    %31 = vector.shape_cast %23 : vector<8x4xbf16> to vector<1x8x4xbf16>
    %32 = vector.shape_cast %24 : vector<8x4xbf16> to vector<1x8x4xbf16>
    %33 = vector.shape_cast %25 : vector<8x4xbf16> to vector<1x8x4xbf16>
    %34 = vector.shape_cast %26 : vector<8x4xbf16> to vector<1x8x4xbf16>
    %35 = vector.shape_cast %27 : vector<8x4xbf16> to vector<1x8x4xbf16>
    %36 = vector.shape_cast %28 : vector<8x4xbf16> to vector<1x8x4xbf16>
    %37 = vector.shape_cast %29 : vector<8x4xbf16> to vector<1x8x4xbf16>
    %38 = vector.shape_cast %30 : vector<8x4xbf16> to vector<1x8x4xbf16>
    %39 = tpu.concatenate %31, %32, %33, %34, %35, %36, %37, %38 in 0 : vector<1x8x4xbf16>, vector<1x8x4xbf16>, vector<1x8x4xbf16>, vector<1x8x4xbf16>, vector<1x8x4xbf16>, vector<1x8x4xbf16>, vector<1x8x4xbf16>, vector<1x8x4xbf16> -> vector<8x8x4xbf16>
    %40 = vector.extract_strided_slice %5 {offsets = [0, 64], sizes = [8, 4], strides = [1, 1]} : vector<8x96xbf16> to vector<8x4xbf16>
    %41 = vector.extract_strided_slice %5 {offsets = [0, 68], sizes = [8, 4], strides = [1, 1]} : vector<8x96xbf16> to vector<8x4xbf16>
    %42 = vector.extract_strided_slice %5 {offsets = [0, 72], sizes = [8, 4], strides = [1, 1]} : vector<8x96xbf16> to vector<8x4xbf16>
    %43 = vector.extract_strided_slice %5 {offsets = [0, 76], sizes = [8, 4], strides = [1, 1]} : vector<8x96xbf16> to vector<8x4xbf16>
    %44 = vector.extract_strided_slice %5 {offsets = [0, 80], sizes = [8, 4], strides = [1, 1]} : vector<8x96xbf16> to vector<8x4xbf16>
    %45 = vector.extract_strided_slice %5 {offsets = [0, 84], sizes = [8, 4], strides = [1, 1]} : vector<8x96xbf16> to vector<8x4xbf16>
    %46 = vector.extract_strided_slice %5 {offsets = [0, 88], sizes = [8, 4], strides = [1, 1]} : vector<8x96xbf16> to vector<8x4xbf16>
    %47 = vector.extract_strided_slice %5 {offsets = [0, 92], sizes = [8, 4], strides = [1, 1]} : vector<8x96xbf16> to vector<8x4xbf16>
    %48 = vector.shape_cast %40 : vector<8x4xbf16> to vector<1x8x4xbf16>
    %49 = vector.shape_cast %41 : vector<8x4xbf16> to vector<1x8x4xbf16>
    %50 = vector.shape_cast %42 : vector<8x4xbf16> to vector<1x8x4xbf16>
    %51 = vector.shape_cast %43 : vector<8x4xbf16> to vector<1x8x4xbf16>
    %52 = vector.shape_cast %44 : vector<8x4xbf16> to vector<1x8x4xbf16>
    %53 = vector.shape_cast %45 : vector<8x4xbf16> to vector<1x8x4xbf16>
    %54 = vector.shape_cast %46 : vector<8x4xbf16> to vector<1x8x4xbf16>
    %55 = vector.shape_cast %47 : vector<8x4xbf16> to vector<1x8x4xbf16>
    %56 = tpu.concatenate %48, %49, %50, %51, %52, %53, %54, %55 in 0 : vector<1x8x4xbf16>, vector<1x8x4xbf16>, vector<1x8x4xbf16>, vector<1x8x4xbf16>, vector<1x8x4xbf16>, vector<1x8x4xbf16>, vector<1x8x4xbf16>, vector<1x8x4xbf16> -> vector<8x8x4xbf16>
    %cst_4 = arith.constant dense<0.000000e+00> : vector<8x8x8xf32>
    %57 = tpu.matmul %22, %39, %cst_4 {dimension_numbers = #tpu.dot_dimension_numbers<[2], [2], [1], [1], [0, 0, 0, 1, 1, 1], [0], [0]>} : vector<8x8x4xbf16>, vector<8x8x4xbf16>, vector<8x8x8xf32> -> vector<8x8x8xf32>
    %cst_5 = arith.constant dense<0xFF800000> : vector<8x8xf32>
    %58 = vector.multi_reduction <maximumf>, %57, %cst_5 [2] : vector<8x8x8xf32> to vector<8x8xf32>
    %59 = vector.shape_cast %58 : vector<8x8xf32> to vector<8x8x1xf32>
    %60 = vector.broadcast %59 : vector<8x8x1xf32> to vector<8x8x8xf32>
    %61 = arith.subf %57, %60 : vector<8x8x8xf32>
    %62 = math.exp %61 : vector<8x8x8xf32>
    %cst_6 = arith.constant dense<0.000000e+00> : vector<8x8xf32>
    %63 = vector.multi_reduction <add>, %62, %cst_6 [2] : vector<8x8x8xf32> to vector<8x8xf32>
    %64 = vector.shape_cast %63 : vector<8x8xf32> to vector<8x8x1xf32>
    %65 = tpu.reciprocal %64 {approx = true} : vector<8x8x1xf32> -> vector<8x8x1xf32>
    %66 = vector.broadcast %65 : vector<8x8x1xf32> to vector<8x8x8xf32>
    %67 = arith.mulf %62, %66 : vector<8x8x8xf32>
    %68 = arith.truncf %67 : vector<8x8x8xf32> to vector<8x8x8xbf16>
    %cst_7 = arith.constant dense<0.000000e+00> : vector<8x8x4xf32>
    %69 = tpu.matmul %68, %56, %cst_7 {dimension_numbers = #tpu.dot_dimension_numbers<[2], [1], [1], [2], [0, 0, 0, 1, 1, 2], [0], [0]>} : vector<8x8x8xbf16>, vector<8x8x4xbf16>, vector<8x8x4xf32> -> vector<8x8x4xf32>
    %70 = vector.extract_strided_slice %69 {offsets = [0, 0, 0], sizes = [1, 8, 4], strides = [1, 1, 1]} : vector<8x8x4xf32> to vector<1x8x4xf32>
    %71 = vector.shape_cast %70 : vector<1x8x4xf32> to vector<8x4xf32>
    %72 = vector.extract_strided_slice %69 {offsets = [1, 0, 0], sizes = [1, 8, 4], strides = [1, 1, 1]} : vector<8x8x4xf32> to vector<1x8x4xf32>
    %73 = vector.shape_cast %72 : vector<1x8x4xf32> to vector<8x4xf32>
    %74 = vector.extract_strided_slice %69 {offsets = [2, 0, 0], sizes = [1, 8, 4], strides = [1, 1, 1]} : vector<8x8x4xf32> to vector<1x8x4xf32>
    %75 = vector.shape_cast %74 : vector<1x8x4xf32> to vector<8x4xf32>
    %76 = vector.extract_strided_slice %69 {offsets = [3, 0, 0], sizes = [1, 8, 4], strides = [1, 1, 1]} : vector<8x8x4xf32> to vector<1x8x4xf32>
    %77 = vector.shape_cast %76 : vector<1x8x4xf32> to vector<8x4xf32>
    %78 = vector.extract_strided_slice %69 {offsets = [4, 0, 0], sizes = [1, 8, 4], strides = [1, 1, 1]} : vector<8x8x4xf32> to vector<1x8x4xf32>
    %79 = vector.shape_cast %78 : vector<1x8x4xf32> to vector<8x4xf32>
    %80 = vector.extract_strided_slice %69 {offsets = [5, 0, 0], sizes = [1, 8, 4], strides = [1, 1, 1]} : vector<8x8x4xf32> to vector<1x8x4xf32>
    %81 = vector.shape_cast %80 : vector<1x8x4xf32> to vector<8x4xf32>
    %82 = vector.extract_strided_slice %69 {offsets = [6, 0, 0], sizes = [1, 8, 4], strides = [1, 1, 1]} : vector<8x8x4xf32> to vector<1x8x4xf32>
    %83 = vector.shape_cast %82 : vector<1x8x4xf32> to vector<8x4xf32>
    %84 = vector.extract_strided_slice %69 {offsets = [7, 0, 0], sizes = [1, 8, 4], strides = [1, 1, 1]} : vector<8x8x4xf32> to vector<1x8x4xf32>
    %85 = vector.shape_cast %84 : vector<1x8x4xf32> to vector<8x4xf32>
    %86 = tpu.concatenate %71, %73, %75, %77, %79, %81, %83, %85 in 1 : vector<8x4xf32>, vector<8x4xf32>, vector<8x4xf32>, vector<8x4xf32>, vector<8x4xf32>, vector<8x4xf32>, vector<8x4xf32>, vector<8x4xf32> -> vector<8x32xf32>
    %87 = arith.truncf %86 : vector<8x32xf32> to vector<8x32xbf16>
    %c0_8 = arith.constant 0 : index
    %c0_9 = arith.constant 0 : index
    %88 = vector.load %arg3[%c0_8, %c0_9] : memref<32x32xbf16, #tpu.memory_space<vmem>>, vector<32x32xbf16>
    %cst_10 = arith.constant dense<0.000000e+00> : vector<8x32xf32>
    %89 = tpu.matmul %87, %88, %cst_10 {dimension_numbers = #tpu.dot_dimension_numbers<[1], [0], [0], [1], [0, 0, 1, 1], [], []>} : vector<8x32xbf16>, vector<32x32xbf16>, vector<8x32xf32> -> vector<8x32xf32>
    %c0_11 = arith.constant 0 : index
    %c0_12 = arith.constant 0 : index
    %90 = vector.load %arg4[%c0_11, %c0_12] : memref<1x32xf32, #tpu.memory_space<vmem>>, vector<1x32xf32>
    %91 = vector.broadcast %90 : vector<1x32xf32> to vector<8x32xf32>
    %92 = arith.addf %89, %91 : vector<8x32xf32>
    %93 = vector.extract_strided_slice %92 {offsets = [0, 0], sizes = [1, 32], strides = [1, 1]} : vector<8x32xf32> to vector<1x32xf32>
    %94 = vector.extract_strided_slice %92 {offsets = [1, 0], sizes = [1, 32], strides = [1, 1]} : vector<8x32xf32> to vector<1x32xf32>
    %95 = vector.extract_strided_slice %92 {offsets = [2, 0], sizes = [1, 32], strides = [1, 1]} : vector<8x32xf32> to vector<1x32xf32>
    %96 = vector.extract_strided_slice %92 {offsets = [3, 0], sizes = [1, 32], strides = [1, 1]} : vector<8x32xf32> to vector<1x32xf32>
    %97 = vector.extract_strided_slice %92 {offsets = [4, 0], sizes = [1, 32], strides = [1, 1]} : vector<8x32xf32> to vector<1x32xf32>
    %98 = vector.extract_strided_slice %92 {offsets = [5, 0], sizes = [1, 32], strides = [1, 1]} : vector<8x32xf32> to vector<1x32xf32>
    %99 = vector.extract_strided_slice %92 {offsets = [6, 0], sizes = [1, 32], strides = [1, 1]} : vector<8x32xf32> to vector<1x32xf32>
    %100 = vector.extract_strided_slice %92 {offsets = [7, 0], sizes = [1, 32], strides = [1, 1]} : vector<8x32xf32> to vector<1x32xf32>
    %101 = tpu.concatenate %93, %94, %95, %96, %97, %98, %99, %100 in 1 : vector<1x32xf32>, vector<1x32xf32>, vector<1x32xf32>, vector<1x32xf32>, vector<1x32xf32>, vector<1x32xf32>, vector<1x32xf32>, vector<1x32xf32> -> vector<1x256xf32>
    %c0_13 = arith.constant 0 : index
    %c0_14 = arith.constant 0 : index
    %c0_15 = arith.constant 0 : index
    %102 = vector.load %arg5[%c0_13, %c0_14, %c0_15] : memref<1x1x256xf32, #tpu.memory_space<vmem>>, vector<1x1x256xf32>
    %103 = vector.shape_cast %102 : vector<1x1x256xf32> to vector<1x256xf32>
    %104 = vector.shape_cast %101 : vector<1x256xf32> to vector<1x1x256xf32>
    tpu.vector_store %arg5[%c0_13, %c0_14, %c0_15], %104 {strides = array<i32>} : memref<1x1x256xf32, #tpu.memory_space<vmem>>, vector<1x1x256xf32>,
    return
  }
  func.func @transform_0(%arg0: i32) -> (i32, i32, i32) {
    %c0_i32 = arith.constant 0 : i32
    %c0_i32_0 = arith.constant 0 : i32
    %c0_i32_1 = arith.constant 0 : i32
    return %arg0, %c0_i32, %c0_i32_0 : i32, i32, i32
  }
  func.func @transform_1(%arg0: i32) -> (i32, i32) {
    %c0_i32 = arith.constant 0 : i32
    %c0_i32_0 = arith.constant 0 : i32
    %c0_i32_1 = arith.constant 0 : i32
    return %c0_i32, %c0_i32_0 : i32, i32
  }
  func.func @transform_2(%arg0: i32) -> (i32, i32) {
    %c0_i32 = arith.constant 0 : i32
    %c0_i32_0 = arith.constant 0 : i32
    %c0_i32_1 = arith.constant 0 : i32
    return %c0_i32, %c0_i32_0 : i32, i32
  }
  func.func @transform_3(%arg0: i32) -> (i32, i32) {
    %c0_i32 = arith.constant 0 : i32
    %c0_i32_0 = arith.constant 0 : i32
    %c0_i32_1 = arith.constant 0 : i32
    return %c0_i32, %c0_i32_0 : i32, i32
  }
  func.func @transform_4(%arg0: i32) -> (i32, i32, i32) {
    %c0_i32 = arith.constant 0 : i32
    %c0_i32_0 = arith.constant 0 : i32
    %c0_i32_1 = arith.constant 0 : i32
    return %arg0, %c0_i32, %c0_i32_0 : i32, i32, i32
  }
}

</mosaic_0001>

<llo_original>
// kernel: tpu_custom_call.1
$region0: #{tpu_custom_call.1}
  #allocation0 [shape = 'u32[]', space=smem, size = 0x4, offset = 0x4, fixed_abs, tag = 'smem constant byte address 0x4 - core index']
  #allocation1 [shape = 'u32[144,128]{1,0:T(1,128)}', space=vmem, size = 0x12000, scoped, tag = 'internal scratch']
  %s0 = inlined_call_operand.hbm [shape: f32[2,8,32], index: 0, kind: input, shape index: {}]
  %s1 = inlined_call_operand.hbm [shape: bf16[32,96], index: 1, kind: input, shape index: {}]
  %s2 = inlined_call_operand.hbm [shape: bf16[32,32], index: 2, kind: input, shape index: {}]
  %s3 = inlined_call_operand.vmem [shape: f32[1,32], index: 3, kind: input, shape index: {}]
  %s4 = inlined_call_operand.hbm [shape: f32[2,1,256], index: 4, kind: output, shape index: {}]
  %s5 = sld [smem:[#allocation0]]
  $region61: #{tpu_custom_call.1} parent=0
    _
  %s7 = ssub.s32 1, %s5
  %s8 = scalar_select 0, %s7, %s5
  $region1: #{tpu_custom_call.1} parent=0
    #allocation2 [shape = 'u8[8192]{0}', space=vmem, size = 0x2000, scoped, tag = 'input window, operand 0']
    #allocation3 [shape = 's32[2]{0}', space=sflag, size = 0x8, scoped, tag = 'scoped memory for tpu_custom_call.1']
    #allocation4 [shape = 's32[2]{0}', space=sflag, size = 0x8, scoped, tag = 'scoped memory for tpu_custom_call.1']
    #allocation5 [shape = 'u8[8192]{0}', space=vmem, size = 0x2000, scoped, tag = 'input window, operand 1, single buffered']
    #allocation6 [shape = 's32[1]{0}', space=sflag, size = 0x4, scoped, tag = 'scoped memory for tpu_custom_call.1']
    #allocation7 [shape = 'u8[8192]{0}', space=vmem, size = 0x2000, scoped, tag = 'input window, operand 2, single buffered']
    #allocation8 [shape = 'u8[2048]{0}', space=vmem, size = 0x800, scoped, tag = 'output window, operand 0']
    %9 = vsyncpa [#allocation3], 0
    %s10 = scalar_lea.sflag [#allocation3], 1
    %11 = vsyncpa %s10, 0
    %12 = vsyncpa [#allocation6], 0
    %13 = vsyncpa [#allocation4], 0
    %s14 = scalar_lea.sflag [#allocation4], 1
    %15 = vsyncpa %s14, 0
    loop: start=0, step=1, limit=4
    $region2: #{tpu_custom_call.1} parent=1 // loop_pre_header
      _
    $region3: #{tpu_custom_call.1} parent=1 // loop_header
      %s17 = sphi 0, %s21
      %p18 = scmp.ge.s32.totalorder %s17, 4
      %s27 = sphi 0, %s29
      %s30 = sphi 0, %s27
      %s31 = sphi 0, %s30
      %s47 = sphi 0, %s31
      %s51 = sphi 0, %s51
      %s53 = sphi 0, %s51
      %s54 = sphi 0, %s53
      %s68 = sphi 0, %s54
      %s72 = sphi 0, %s72
      %s74 = sphi 0, %s72
      %s75 = sphi 0, %s74
      %s89 = sphi 0, %s75
      %s93 = sphi 0, %s93
      %s95 = sphi 0, %s93
      %s96 = sphi 0, %s95
      %s110 = sphi 0, %s96
      %s116 = sphi 0, %s118
      %s119 = sphi 0, %s116
      %s120 = sphi 0, %s119
      %s136 = sphi 0, %s120
    $region4: #{tpu_custom_call.1} parent=1 // loop_header_branch
      %20 = sbr.rel (%p18) target = $region8
    $region5: #{tpu_custom_call.1} parent=1 // loop_body
      %s22 = ssub.s32 %s17, 1
      %s23 = ssub.s32 %s17, 2
      %s24 = sadd.s32 %s17, 1
      %s25 = ssub.s32 %s17, %s24
      %p26 = scmp.eq.s32.totalorder %s25, 0
      %s28 = sadd.s32 %s27, 1
      %s29 = scalar_select %p26, %s27, %s28
      %p32 = pneg %p26
      %p33 = scmp.eq.s32.totalorder %s17, 1
      %p34 = por %p32, %p33
      %p35 = scmp.ne.s32.totalorder %s27, %s30
      %p36 = scmp.eq.s32.totalorder %s17, 0
      %p37 = por %p35, %p36
      %p38 = scmp.ne.s32.totalorder %s27, %s30
      %p39 = scmp.eq.s32.totalorder %s22, 1
      %p40 = por %p38, %p39
      %p41 = scmp.ne.s32.totalorder %s30, %s31
      %p42 = scmp.eq.s32.totalorder %s22, 0
      %p43 = por %p41, %p42
      %p44 = scmp.ne.s32.totalorder %s30, %s31
      %p45 = scmp.eq.s32.totalorder %s23, 1
      %p46 = por %p44, %p45
      %p48 = scmp.ne.s32.totalorder %s31, %s47
      %p49 = scmp.eq.s32.totalorder %s23, 0
      %p50 = por %p48, %p49
      %s52 = sadd.s32 %s51, 1
      %p55 = scmp.eq.s32.totalorder %s17, 1
      %p56 = scmp.ne.s32.totalorder %s51, %s53
      %p57 = scmp.eq.s32.totalorder %s17, 0
      %p58 = por %p56, %p57
      %p59 = scmp.ne.s32.totalorder %s51, %s53
      %p60 = scmp.eq.s32.totalorder %s22, 1
      %p61 = por %p59, %p60
      %p62 = scmp.ne.s32.totalorder %s53, %s54
      %p63 = scmp.eq.s32.totalorder %s22, 0
      %p64 = por %p62, %p63
      %p65 = scmp.ne.s32.totalorder %s53, %s54
      %p66 = scmp.eq.s32.totalorder %s23, 1
      %p67 = por %p65, %p66
      %p69 = scmp.ne.s32.totalorder %s54, %s68
      %p70 = scmp.eq.s32.totalorder %s23, 0
      %p71 = por %p69, %p70
      %s73 = sadd.s32 %s72, 1
      %p76 = scmp.eq.s32.totalorder %s17, 1
      %p77 = scmp.ne.s32.totalorder %s72, %s74
      %p78 = scmp.eq.s32.totalorder %s17, 0
      %p79 = por %p77, %p78
      %p80 = scmp.ne.s32.totalorder %s72, %s74
      %p81 = scmp.eq.s32.totalorder %s22, 1
      %p82 = por %p80, %p81
      %p83 = scmp.ne.s32.totalorder %s74, %s75
      %p84 = scmp.eq.s32.totalorder %s22, 0
      %p85 = por %p83, %p84
      %p86 = scmp.ne.s32.totalorder %s74, %s75
      %p87 = scmp.eq.s32.totalorder %s23, 1
      %p88 = por %p86, %p87
      %p90 = scmp.ne.s32.totalorder %s75, %s89
      %p91 = scmp.eq.s32.totalorder %s23, 0
      %p92 = por %p90, %p91
      %s94 = sadd.s32 %s93, 1
      %p97 = scmp.eq.s32.totalorder %s17, 1
      %p98 = scmp.ne.s32.totalorder %s93, %s95
      %p99 = scmp.eq.s32.totalorder %s17, 0
      %p100 = por %p98, %p99
      %p101 = scmp.ne.s32.totalorder %s93, %s95
      %p102 = scmp.eq.s32.totalorder %s22, 1
      %p103 = por %p101, %p102
      %p104 = scmp.ne.s32.totalorder %s95, %s96
      %p105 = scmp.eq.s32.totalorder %s22, 0
      %p106 = por %p104, %p105
      %p107 = scmp.ne.s32.totalorder %s95, %s96
      %p108 = scmp.eq.s32.totalorder %s23, 1
      %p109 = por %p107, %p108
      %p111 = scmp.ne.s32.totalorder %s96, %s110
      %p112 = scmp.eq.s32.totalorder %s23, 0
      %p113 = por %p111, %p112
      %s114 = ssub.s32 %s17, %s24
      %p115 = scmp.eq.s32.totalorder %s114, 0
      %s117 = sadd.s32 %s116, 1
      %s118 = scalar_select %p115, %s116, %s117
      %p121 = pneg %p115
      %p122 = scmp.eq.s32.totalorder %s17, 1
      %p123 = por %p121, %p122
      %p124 = scmp.ne.s32.totalorder %s116, %s119
      %p125 = scmp.eq.s32.totalorder %s17, 0
      %p126 = por %p124, %p125
      %p127 = scmp.ne.s32.totalorder %s116, %s119
      %p128 = scmp.eq.s32.totalorder %s22, 1
      %p129 = por %p127, %p128
      %p130 = scmp.ne.s32.totalorder %s119, %s120
      %p131 = scmp.eq.s32.totalorder %s22, 0
      %p132 = por %p130, %p131
      %p133 = scmp.ne.s32.totalorder %s119, %s120
      %p134 = scmp.eq.s32.totalorder %s23, 1
      %p135 = por %p133, %p134
      %p137 = scmp.ne.s32.totalorder %s120, %s136
      %p138 = scmp.eq.s32.totalorder %s23, 0
      %p139 = por %p137, %p138
      %p140 = scmp.le.s32.totalorder 1, %s17
      %p141 = scmp.lt.s32.totalorder %s17, 3
      %p142 = pnand %p140, %p141
      %p143 = pneg %p142
      // Predicated region
      $region9: #{tpu_custom_call.1} parent=5 // pred_check
        _
      $region10: #{tpu_custom_call.1} parent=5 // pred_check_branch
        %145 = sbr.rel (%p142) target = $region12
      $region11: #{tpu_custom_call.1} parent=5 // pred_region
        %s146 = ssub.s32 %s17, 1
        // Predicated region
        $region13: #{tpu_custom_call.1} parent=11 // pred_check
          %p147 = pneg %p64
        $region14: #{tpu_custom_call.1} parent=11 // pred_check_branch
          %149 = sbr.rel (%p147) target = $region16
        $region15: #{tpu_custom_call.1} parent=11 // pred_region
          %s151 = ssub.s32 256, 256
          %152 = vsyncadd [#allocation6], %s151
          %s153 = sshll.u32 [#allocation5], 4
          %s154 = int_to_ptr.vmem [resolvable:$true] %s153
          %159 = dma.hbm_to_vmem [thread:$0]  %s1, 256, %s154, [#allocation6], 64, 64, 4
        $region16: #{tpu_custom_call.1} parent=11 // pred_fallthru
          _
        // Predicated region
        $region17: #{tpu_custom_call.1} parent=11 // pred_check
          %p160 = pneg %p85
        $region18: #{tpu_custom_call.1} parent=11 // pred_check_branch
          %162 = sbr.rel (%p160) target = $region20
        $region19: #{tpu_custom_call.1} parent=11 // pred_region
          %s164 = ssub.s32 256, 256
          %165 = vsyncadd [#allocation6], %s164
          %s166 = sshll.u32 [#allocation7], 4
          %s167 = int_to_ptr.vmem [resolvable:$true] %s166
          %172 = dma.hbm_to_vmem [thread:$0]  %s2, 256, %s167, [#allocation6], 64, 64, 4
        $region20: #{tpu_custom_call.1} parent=11 // pred_fallthru
          _
        // Predicated region
        $region21: #{tpu_custom_call.1} parent=11 // pred_check
          %p173 = pneg %p106
        $region22: #{tpu_custom_call.1} parent=11 // pred_check_branch
          %175 = sbr.rel (%p173) target = $region24
        $region23: #{tpu_custom_call.1} parent=11 // pred_region
          _
        $region24: #{tpu_custom_call.1} parent=11 // pred_fallthru
          _
      $region12: #{tpu_custom_call.1} parent=5 // pred_fallthru
        _
      %p176 = scmp.lt.s32.totalorder %s17, 2
      // Predicated region
      $region25: #{tpu_custom_call.1} parent=5 // pred_check
        %p177 = pneg %p176
      $region26: #{tpu_custom_call.1} parent=5 // pred_check_branch
        %179 = sbr.rel (%p177) target = $region28
      $region27: #{tpu_custom_call.1} parent=5 // pred_region
        // Predicated region
        $region29: #{tpu_custom_call.1} parent=27 // pred_check
          %p180 = pneg %p37
        $region30: #{tpu_custom_call.1} parent=27 // pred_check_branch
          %182 = sbr.rel (%p180) target = $region32
        $region31: #{tpu_custom_call.1} parent=27 // pred_region
          %s183 = sand.u32 %s27, 1
          %s184 = scalar_lea.sflag [#allocation3], %s183
          %s185 = sand.u32 %s27, 1
          %s186 = smul.addr %s185, 8
          %s187 = scalar_lea.vmem [#allocation2], %s186
          %s189 = ssub.s32 128, 128
          %190 = vsyncadd %s184, %s189
          %s191 = smul.addr %s17, 128
          %s192 = scalar_lea.hbm %s0, %s191
          %s194 = sshll.u32 %s187, 4
          %s195 = int_to_ptr.vmem [resolvable:$true] %s194
          %197 = dma.hbm_to_vmem [thread:$0]  %s192, 128, %s195, %s184
        $region32: #{tpu_custom_call.1} parent=27 // pred_fallthru
          _
      $region28: #{tpu_custom_call.1} parent=5 // pred_fallthru
        _
      %p198 = scmp.le.s32.totalorder 1, %s17
      %p199 = scmp.lt.s32.totalorder %s17, 3
      %p200 = pnand %p198, %p199
      %p201 = pneg %p200
      // Predicated region
      $region33: #{tpu_custom_call.1} parent=5 // pred_check
        _
      $region34: #{tpu_custom_call.1} parent=5 // pred_check_branch
        %203 = sbr.rel (%p200) target = $region36
      $region35: #{tpu_custom_call.1} parent=5 // pred_region
        %s204 = ssub.s32 %s17, 1
        %s205 = sand.u32 %s30, 1
        %s206 = scalar_lea.sflag [#allocation3], %s205
        %s207 = sand.u32 %s30, 1
        %s208 = smul.addr %s207, 8
        %s209 = scalar_lea.vmem [#allocation2], %s208
        // Predicated region
        $region37: #{tpu_custom_call.1} parent=35 // pred_check
          %p210 = pneg %p43
        $region38: #{tpu_custom_call.1} parent=35 // pred_check_branch
          %212 = sbr.rel (%p210) target = $region40
        $region39: #{tpu_custom_call.1} parent=35 // pred_region
          %213 = dma.done %s206, 128
        $region40: #{tpu_custom_call.1} parent=35 // pred_fallthru
          _
        // Predicated region
        $region41: #{tpu_custom_call.1} parent=35 // pred_check
          %p214 = pneg %p64
        $region42: #{tpu_custom_call.1} parent=35 // pred_check_branch
          %216 = sbr.rel (%p214) target = $region44
        $region43: #{tpu_custom_call.1} parent=35 // pred_region
          %217 = dma.done [#allocation6], 256
        $region44: #{tpu_custom_call.1} parent=35 // pred_fallthru
          _
        // Predicated region
        $region45: #{tpu_custom_call.1} parent=35 // pred_check
          %p218 = pneg %p85
        $region46: #{tpu_custom_call.1} parent=35 // pred_check_branch
          %220 = sbr.rel (%p218) target = $region48
        $region47: #{tpu_custom_call.1} parent=35 // pred_region
          %221 = dma.done [#allocation6], 256
        $region48: #{tpu_custom_call.1} parent=35 // pred_fallthru
          _
        %s222 = sand.u32 %s30, 1
        %s223 = scalar_lea.sflag [#allocation3], %s222
        %s224 = sand.u32 %s30, 1
        %s225 = smul.addr %s224, 8
        %s226 = scalar_lea.vmem [#allocation2], %s225
        %p227 = pneg %p43
        %p228 = pneg %p40
        %p229 = pneg %p64
        %p230 = pneg %p61
        %p231 = pneg %p85
        %p232 = pneg %p82
        %p233 = pneg %p106
        %p234 = pneg %p103
        %p235 = pneg %p132
        %p236 = pneg %p129
        %s237 = sand.u32 %s119, 1
        %s238 = scalar_lea.sflag [#allocation4], %s237
        %s239 = sand.u32 %s119, 1
        %s240 = smul.addr %s239, 2
        %s241 = scalar_lea.vmem [#allocation8], %s240
        %v243 = vld [vmem:[%s209] sm:$0xff]
        %v244 = vpack.c.bf16 %v243, %v243
        %v245 = vld [vmem:[#allocation5] sm:$0xf]
        %v246 = vld [vmem:[#allocation5 + $0x4] sm:$0xf]
        %v247 = vld [vmem:[#allocation5 + $0x8] sm:$0xf]
        %v248 = vld [vmem:[#allocation5 + $0xc] sm:$0xf]
        %v253 = vunpack.c.l.b16 %v245
        %v254 = vunpack.c.l.b16 %v246
        %v255 = vunpack.c.l.b16 %v247
        %v256 = vunpack.c.l.b16 %v248
        %v257 = vpack.c.b16 %v254, %v253
        %v258 = vpack.c.b16 %v256, %v255
        %vm261 = vcmask 261120
        %v263 = vsel %vm261, %v244, 0
        %265 = vmatprep.subr.bf16.mxu0 0
        %266 = vmatpush1.bf16.msra.mxu0 %v257
        %267 = vmatprep.subr.bf16.mxu0 0
        %268 = vmatpush1.bf16.msra.mxu0 %v258
        %269 = vmatprep.subr.bf16.mxu0 0
        %270 = vmatpush1.bf16.msra.mxu0 0
        %271 = vmatprep.subr.bf16.mxu0 0
        %272 = vmatpush1.bf16.msra.mxu0 0
        %273 = vmatprep.subr.bf16.mxu0 0
        %274 = vmatpush1.bf16.msra.mxu0 0
        %275 = vmatprep.subr.bf16.mxu0 0
        %276 = vmatpush1.bf16.msra.mxu0 0
        %277 = vmatprep.subr.bf16.mxu0 0
        %278 = vmatpush1.bf16.msra.mxu0 0
        %279 = vmatprep.subr.bf16.mxu0 0
        %280 = vmatpush1.bf16.msra.mxu0 0
        %281 = vmatprep.subr.bf16.mxu0 0
        %282 = vmatpush1.bf16.msra.mxu0 0
        %283 = vmatprep.subr.bf16.mxu0 0
        %284 = vmatpush1.bf16.msra.mxu0 0
        %285 = vmatprep.subr.bf16.mxu0 0
        %286 = vmatpush1.bf16.msra.mxu0 0
        %287 = vmatprep.subr.bf16.mxu0 0
        %288 = vmatpush1.bf16.msra.mxu0 0
        %289 = vmatprep.subr.bf16.mxu0 0
        %290 = vmatpush1.bf16.msra.mxu0 0
        %291 = vmatprep.subr.bf16.mxu0 0
        %292 = vmatpush1.bf16.msra.mxu0 0
        %293 = vmatprep.subr.bf16.mxu0 0
        %294 = vmatpush1.bf16.msra.mxu0 0
        %295 = vmatprep.subr.bf16.mxu0 0
        %296 = vmatpush1.bf16.msra.mxu0 0
        %297 = vmatprep.mubr.bf16.mxu0 0
        %298 = vmatmul.mubr.bf16.gmra.mrb[0].mxu0 %v263
        %v299 = vpop.f32.mrb[0].mxu0
        %v300 = vadd.f32 0.0, %v299
        %v301 = vpop.f32.mrb[0].mxu0
        %v302 = vpop.f32.mrb[0].mxu0
        %v303 = vpop.f32.mrb[0].mxu0
        %304 = vdwg.mxu0
        %v305 = vpack.c.bf16 %v300, %v300
        %307 = vrot.lane.b32.xlu0 %v305, 124
        %v308 = vpop.permute.xlu0 %307
        %309 = vrot.lane.b32.xlu0 %v305, 120
        %v310 = vpop.permute.xlu0 %309
        %311 = vrot.lane.b32.xlu0 %v305, 116
        %v312 = vpop.permute.xlu0 %311
        %313 = vrot.lane.b32.xlu0 %v305, 112
        %v314 = vpop.permute.xlu0 %313
        %315 = vrot.lane.b32.xlu0 %v305, 108
        %v316 = vpop.permute.xlu0 %315
        %317 = vrot.lane.b32.xlu0 %v305, 104
        %v318 = vpop.permute.xlu0 %317
        %319 = vrot.lane.b32.xlu0 %v305, 100
        %v320 = vpop.permute.xlu0 %319
        %321 = vrot.lane.b32.xlu0 %v305, 96
        %v322 = vpop.permute.xlu0 %321
        %vm323 = vcmask 31744
        %v325 = vsel %vm323, %v305, 0
        %v328 = vsel %vm323, %v322, 0
        %330 = vmatprep.subr.bf16.mxu0 0
        %331 = vmatpush1.bf16.xpose.msra.mxu0 %v328
        %332 = vmatprep.subr.bf16.mxu0 0
        %333 = vmatpush1.bf16.xpose.msra.mxu0 0
        %334 = vmatprep.subr.bf16.mxu0 0
        %335 = vmatpush1.bf16.xpose.msra.mxu0 0
        %336 = vmatprep.subr.bf16.mxu0 0
        %337 = vmatpush1.bf16.xpose.msra.mxu0 0
        %338 = vmatprep.subr.bf16.mxu0 0
        %339 = vmatpush1.bf16.xpose.msra.mxu0 0
        %340 = vmatprep.subr.bf16.mxu0 0
        %341 = vmatpush1.bf16.xpose.msra.mxu0 0
        %342 = vmatprep.subr.bf16.mxu0 0
        %343 = vmatpush1.bf16.xpose.msra.mxu0 0
        %344 = vmatprep.subr.bf16.mxu0 0
        %345 = vmatpush1.bf16.xpose.msra.mxu0 0
        %346 = vmatprep.subr.bf16.mxu0 0
        %347 = vmatpush1.bf16.xpose.msra.mxu0 0
        %348 = vmatprep.subr.bf16.mxu0 0
        %349 = vmatpush1.bf16.xpose.msra.mxu0 0
        %350 = vmatprep.subr.bf16.mxu0 0
        %351 = vmatpush1.bf16.xpose.msra.mxu0 0
        %352 = vmatprep.subr.bf16.mxu0 0
        %353 = vmatpush1.bf16.xpose.msra.mxu0 0
        %354 = vmatprep.subr.bf16.mxu0 0
        %355 = vmatpush1.bf16.xpose.msra.mxu0 0
        %356 = vmatprep.subr.bf16.mxu0 0
        %357 = vmatpush1.bf16.xpose.msra.mxu0 0
        %358 = vmatprep.subr.bf16.mxu0 0
        %359 = vmatpush1.bf16.xpose.msra.mxu0 0
        %360 = vmatprep.subr.bf16.mxu0 0
        %361 = vmatpush1.bf16.xpose.msra.mxu0 0
        %362 = vmatprep.mubr.bf16.mxu0 0
        %363 = vmatmul.mubr.bf16.gmra.mrb[0].mxu0 %v325
        %v364 = vpop.f32.mrb[0].mxu0
        %v365 = vadd.f32 0.0, %v364
        %v366 = vpop.f32.mrb[0].mxu0
        %v367 = vpop.f32.mrb[0].mxu0
        %v368 = vpop.f32.mrb[0].mxu0
        %369 = vdwg.mxu0
        %370 = vrot.lane.b32.xlu0 %v308, 96
        %v371 = vpop.permute.xlu0 %370
        %v373 = vsel %vm323, %v308, 0
        %v376 = vsel %vm323, %v371, 0
        %378 = vmatprep.subr.bf16.mxu0 0
        %379 = vmatpush1.bf16.xpose.msra.mxu0 %v376
        %380 = vmatprep.subr.bf16.mxu0 0
        %381 = vmatpush1.bf16.xpose.msra.mxu0 0
        %382 = vmatprep.subr.bf16.mxu0 0
        %383 = vmatpush1.bf16.xpose.msra.mxu0 0
        %384 = vmatprep.subr.bf16.mxu0 0
        %385 = vmatpush1.bf16.xpose.msra.mxu0 0
        %386 = vmatprep.subr.bf16.mxu0 0
        %387 = vmatpush1.bf16.xpose.msra.mxu0 0
        %388 = vmatprep.subr.bf16.mxu0 0
        %389 = vmatpush1.bf16.xpose.msra.mxu0 0
        %390 = vmatprep.subr.bf16.mxu0 0
        %391 = vmatpush1.bf16.xpose.msra.mxu0 0
        %392 = vmatprep.subr.bf16.mxu0 0
        %393 = vmatpush1.bf16.xpose.msra.mxu0 0
        %394 = vmatprep.subr.bf16.mxu0 0
        %395 = vmatpush1.bf16.xpose.msra.mxu0 0
        %396 = vmatprep.subr.bf16.mxu0 0
        %397 = vmatpush1.bf16.xpose.msra.mxu0 0
        %398 = vmatprep.subr.bf16.mxu0 0
        %399 = vmatpush1.bf16.xpose.msra.mxu0 0
        %400 = vmatprep.subr.bf16.mxu0 0
        %401 = vmatpush1.bf16.xpose.msra.mxu0 0
        %402 = vmatprep.subr.bf16.mxu0 0
        %403 = vmatpush1.bf16.xpose.msra.mxu0 0
        %404 = vmatprep.subr.bf16.mxu0 0
        %405 = vmatpush1.bf16.xpose.msra.mxu0 0
        %406 = vmatprep.subr.bf16.mxu0 0
        %407 = vmatpush1.bf16.xpose.msra.mxu0 0
        %408 = vmatprep.subr.bf16.mxu0 0
        %409 = vmatpush1.bf16.xpose.msra.mxu0 0
        %410 = vmatprep.mubr.bf16.mxu0 0
        %411 = vmatmul.mubr.bf16.gmra.mrb[0].mxu0 %v373
        %v412 = vpop.f32.mrb[0].mxu0
        %v413 = vadd.f32 0.0, %v412
        %v414 = vpop.f32.mrb[0].mxu0
        %v415 = vpop.f32.mrb[0].mxu0
        %v416 = vpop.f32.mrb[0].mxu0
        %417 = vdwg.mxu0
        %418 = vrot.lane.b32.xlu0 %v310, 96
        %v419 = vpop.permute.xlu0 %418
        %v421 = vsel %vm323, %v310, 0
        %v424 = vsel %vm323, %v419, 0
        %426 = vmatprep.subr.bf16.mxu0 0
        %427 = vmatpush1.bf16.xpose.msra.mxu0 %v424
        %428 = vmatprep.subr.bf16.mxu0 0
        %429 = vmatpush1.bf16.xpose.msra.mxu0 0
        %430 = vmatprep.subr.bf16.mxu0 0
        %431 = vmatpush1.bf16.xpose.msra.mxu0 0
        %432 = vmatprep.subr.bf16.mxu0 0
        %433 = vmatpush1.bf16.xpose.msra.mxu0 0
        %434 = vmatprep.subr.bf16.mxu0 0
        %435 = vmatpush1.bf16.xpose.msra.mxu0 0
        %436 = vmatprep.subr.bf16.mxu0 0
        %437 = vmatpush1.bf16.xpose.msra.mxu0 0
        %438 = vmatprep.subr.bf16.mxu0 0
        %439 = vmatpush1.bf16.xpose.msra.mxu0 0
        %440 = vmatprep.subr.bf16.mxu0 0
        %441 = vmatpush1.bf16.xpose.msra.mxu0 0
        %442 = vmatprep.subr.bf16.mxu0 0
        %443 = vmatpush1.bf16.xpose.msra.mxu0 0
        %444 = vmatprep.subr.bf16.mxu0 0
        %445 = vmatpush1.bf16.xpose.msra.mxu0 0
        %446 = vmatprep.subr.bf16.mxu0 0
        %447 = vmatpush1.bf16.xpose.msra.mxu0 0
        %448 = vmatprep.subr.bf16.mxu0 0
        %449 = vmatpush1.bf16.xpose.msra.mxu0 0
        %450 = vmatprep.subr.bf16.mxu0 0
        %451 = vmatpush1.bf16.xpose.msra.mxu0 0
        %452 = vmatprep.subr.bf16.mxu0 0
        %453 = vmatpush1.bf16.xpose.msra.mxu0 0
        %454 = vmatprep.subr.bf16.mxu0 0
        %455 = vmatpush1.bf16.xpose.msra.mxu0 0
        %456 = vmatprep.subr.bf16.mxu0 0
        %457 = vmatpush1.bf16.xpose.msra.mxu0 0
        %458 = vmatprep.mubr.bf16.mxu0 0
        %459 = vmatmul.mubr.bf16.gmra.mrb[0].mxu0 %v421
        %v460 = vpop.f32.mrb[0].mxu0
        %v461 = vadd.f32 0.0, %v460
        %v462 = vpop.f32.mrb[0].mxu0
        %v463 = vpop.f32.mrb[0].mxu0
        %v464 = vpop.f32.mrb[0].mxu0
        %465 = vdwg.mxu0
        %466 = vrot.lane.b32.xlu0 %v312, 96
        %v467 = vpop.permute.xlu0 %466
        %v469 = vsel %vm323, %v312, 0
        %v472 = vsel %vm323, %v467, 0
        %474 = vmatprep.subr.bf16.mxu0 0
        %475 = vmatpush1.bf16.xpose.msra.mxu0 %v472
        %476 = vmatprep.subr.bf16.mxu0 0
        %477 = vmatpush1.bf16.xpose.msra.mxu0 0
        %478 = vmatprep.subr.bf16.mxu0 0
        %479 = vmatpush1.bf16.xpose.msra.mxu0 0
        %480 = vmatprep.subr.bf16.mxu0 0
        %481 = vmatpush1.bf16.xpose.msra.mxu0 0
        %482 = vmatprep.subr.bf16.mxu0 0
        %483 = vmatpush1.bf16.xpose.msra.mxu0 0
        %484 = vmatprep.subr.bf16.mxu0 0
        %485 = vmatpush1.bf16.xpose.msra.mxu0 0
        %486 = vmatprep.subr.bf16.mxu0 0
        %487 = vmatpush1.bf16.xpose.msra.mxu0 0
        %488 = vmatprep.subr.bf16.mxu0 0
        %489 = vmatpush1.bf16.xpose.msra.mxu0 0
        %490 = vmatprep.subr.bf16.mxu0 0
        %491 = vmatpush1.bf16.xpose.msra.mxu0 0
        %492 = vmatprep.subr.bf16.mxu0 0
        %493 = vmatpush1.bf16.xpose.msra.mxu0 0
        %494 = vmatprep.subr.bf16.mxu0 0
        %495 = vmatpush1.bf16.xpose.msra.mxu0 0
        %496 = vmatprep.subr.bf16.mxu0 0
        %497 = vmatpush1.bf16.xpose.msra.mxu0 0
        %498 = vmatprep.subr.bf16.mxu0 0
        %499 = vmatpush1.bf16.xpose.msra.mxu0 0
        %500 = vmatprep.subr.bf16.mxu0 0
        %501 = vmatpush1.bf16.xpose.msra.mxu0 0
        %502 = vmatprep.subr.bf16.mxu0 0
        %503 = vmatpush1.bf16.xpose.msra.mxu0 0
        %504 = vmatprep.subr.bf16.mxu0 0
        %505 = vmatpush1.bf16.xpose.msra.mxu0 0
        %506 = vmatprep.mubr.bf16.mxu0 0
        %507 = vmatmul.mubr.bf16.gmra.mrb[0].mxu0 %v469
        %v508 = vpop.f32.mrb[0].mxu0
        %v509 = vadd.f32 0.0, %v508
        %v510 = vpop.f32.mrb[0].mxu0
        %v511 = vpop.f32.mrb[0].mxu0
        %v512 = vpop.f32.mrb[0].mxu0
        %513 = vdwg.mxu0
        %514 = vrot.lane.b32.xlu0 %v314, 96
        %v515 = vpop.permute.xlu0 %514
        %v517 = vsel %vm323, %v314, 0
        %v520 = vsel %vm323, %v515, 0
        %522 = vmatprep.subr.bf16.mxu0 0
        %523 = vmatpush1.bf16.xpose.msra.mxu0 %v520
        %524 = vmatprep.subr.bf16.mxu0 0
        %525 = vmatpush1.bf16.xpose.msra.mxu0 0
        %526 = vmatprep.subr.bf16.mxu0 0
        %527 = vmatpush1.bf16.xpose.msra.mxu0 0
        %528 = vmatprep.subr.bf16.mxu0 0
        %529 = vmatpush1.bf16.xpose.msra.mxu0 0
        %530 = vmatprep.subr.bf16.mxu0 0
        %531 = vmatpush1.bf16.xpose.msra.mxu0 0
        %532 = vmatprep.subr.bf16.mxu0 0
        %533 = vmatpush1.bf16.xpose.msra.mxu0 0
        %534 = vmatprep.subr.bf16.mxu0 0
        %535 = vmatpush1.bf16.xpose.msra.mxu0 0
        %536 = vmatprep.subr.bf16.mxu0 0
        %537 = vmatpush1.bf16.xpose.msra.mxu0 0
        %538 = vmatprep.subr.bf16.mxu0 0
        %539 = vmatpush1.bf16.xpose.msra.mxu0 0
        %540 = vmatprep.subr.bf16.mxu0 0
        %541 = vmatpush1.bf16.xpose.msra.mxu0 0
        %542 = vmatprep.subr.bf16.mxu0 0
        %543 = vmatpush1.bf16.xpose.msra.mxu0 0
        %544 = vmatprep.subr.bf16.mxu0 0
        %545 = vmatpush1.bf16.xpose.msra.mxu0 0
        %546 = vmatprep.subr.bf16.mxu0 0
        %547 = vmatpush1.bf16.xpose.msra.mxu0 0
        %548 = vmatprep.subr.bf16.mxu0 0
        %549 = vmatpush1.bf16.xpose.msra.mxu0 0
        %550 = vmatprep.subr.bf16.mxu0 0
        %551 = vmatpush1.bf16.xpose.msra.mxu0 0
        %552 = vmatprep.subr.bf16.mxu0 0
        %553 = vmatpush1.bf16.xpose.msra.mxu0 0
        %554 = vmatprep.mubr.bf16.mxu0 0
        %555 = vmatmul.mubr.bf16.gmra.mrb[0].mxu0 %v517
        %v556 = vpop.f32.mrb[0].mxu0
        %v557 = vadd.f32 0.0, %v556
        %v558 = vpop.f32.mrb[0].mxu0
        %v559 = vpop.f32.mrb[0].mxu0
        %v560 = vpop.f32.mrb[0].mxu0
        %561 = vdwg.mxu0
        %562 = vrot.lane.b32.xlu0 %v316, 96
        %v563 = vpop.permute.xlu0 %562
        %v565 = vsel %vm323, %v316, 0
        %v568 = vsel %vm323, %v563, 0
        %570 = vmatprep.subr.bf16.mxu0 0
        %571 = vmatpush1.bf16.xpose.msra.mxu0 %v568
        %572 = vmatprep.subr.bf16.mxu0 0
        %573 = vmatpush1.bf16.xpose.msra.mxu0 0
        %574 = vmatprep.subr.bf16.mxu0 0
        %575 = vmatpush1.bf16.xpose.msra.mxu0 0
        %576 = vmatprep.subr.bf16.mxu0 0
        %577 = vmatpush1.bf16.xpose.msra.mxu0 0
        %578 = vmatprep.subr.bf16.mxu0 0
        %579 = vmatpush1.bf16.xpose.msra.mxu0 0
        %580 = vmatprep.subr.bf16.mxu0 0
        %581 = vmatpush1.bf16.xpose.msra.mxu0 0
        %582 = vmatprep.subr.bf16.mxu0 0
        %583 = vmatpush1.bf16.xpose.msra.mxu0 0
        %584 = vmatprep.subr.bf16.mxu0 0
        %585 = vmatpush1.bf16.xpose.msra.mxu0 0
        %586 = vmatprep.subr.bf16.mxu0 0
        %587 = vmatpush1.bf16.xpose.msra.mxu0 0
        %588 = vmatprep.subr.bf16.mxu0 0
        %589 = vmatpush1.bf16.xpose.msra.mxu0 0
        %590 = vmatprep.subr.bf16.mxu0 0
        %591 = vmatpush1.bf16.xpose.msra.mxu0 0
        %592 = vmatprep.subr.bf16.mxu0 0
        %593 = vmatpush1.bf16.xpose.msra.mxu0 0
        %594 = vmatprep.subr.bf16.mxu0 0
        %595 = vmatpush1.bf16.xpose.msra.mxu0 0
        %596 = vmatprep.subr.bf16.mxu0 0
        %597 = vmatpush1.bf16.xpose.msra.mxu0 0
        %598 = vmatprep.subr.bf16.mxu0 0
        %599 = vmatpush1.bf16.xpose.msra.mxu0 0
        %600 = vmatprep.subr.bf16.mxu0 0
        %601 = vmatpush1.bf16.xpose.msra.mxu0 0
        %602 = vmatprep.mubr.bf16.mxu0 0
        %603 = vmatmul.mubr.bf16.gmra.mrb[0].mxu0 %v565
        %v604 = vpop.f32.mrb[0].mxu0
        %v605 = vadd.f32 0.0, %v604
        %v606 = vpop.f32.mrb[0].mxu0
        %v607 = vpop.f32.mrb[0].mxu0
        %v608 = vpop.f32.mrb[0].mxu0
        %609 = vdwg.mxu0
        %610 = vrot.lane.b32.xlu0 %v318, 96
        %v611 = vpop.permute.xlu0 %610
        %v613 = vsel %vm323, %v318, 0
        %v616 = vsel %vm323, %v611, 0
        %618 = vmatprep.subr.bf16.mxu0 0
        %619 = vmatpush1.bf16.xpose.msra.mxu0 %v616
        %620 = vmatprep.subr.bf16.mxu0 0
        %621 = vmatpush1.bf16.xpose.msra.mxu0 0
        %622 = vmatprep.subr.bf16.mxu0 0
        %623 = vmatpush1.bf16.xpose.msra.mxu0 0
        %624 = vmatprep.subr.bf16.mxu0 0
        %625 = vmatpush1.bf16.xpose.msra.mxu0 0
        %626 = vmatprep.subr.bf16.mxu0 0
        %627 = vmatpush1.bf16.xpose.msra.mxu0 0
        %628 = vmatprep.subr.bf16.mxu0 0
        %629 = vmatpush1.bf16.xpose.msra.mxu0 0
        %630 = vmatprep.subr.bf16.mxu0 0
        %631 = vmatpush1.bf16.xpose.msra.mxu0 0
        %632 = vmatprep.subr.bf16.mxu0 0
        %633 = vmatpush1.bf16.xpose.msra.mxu0 0
        %634 = vmatprep.subr.bf16.mxu0 0
        %635 = vmatpush1.bf16.xpose.msra.mxu0 0
        %636 = vmatprep.subr.bf16.mxu0 0
        %637 = vmatpush1.bf16.xpose.msra.mxu0 0
        %638 = vmatprep.subr.bf16.mxu0 0
        %639 = vmatpush1.bf16.xpose.msra.mxu0 0
        %640 = vmatprep.subr.bf16.mxu0 0
        %641 = vmatpush1.bf16.xpose.msra.mxu0 0
        %642 = vmatprep.subr.bf16.mxu0 0
        %643 = vmatpush1.bf16.xpose.msra.mxu0 0
        %644 = vmatprep.subr.bf16.mxu0 0
        %645 = vmatpush1.bf16.xpose.msra.mxu0 0
        %646 = vmatprep.subr.bf16.mxu0 0
        %647 = vmatpush1.bf16.xpose.msra.mxu0 0
        %648 = vmatprep.subr.bf16.mxu0 0
        %649 = vmatpush1.bf16.xpose.msra.mxu0 0
        %650 = vmatprep.mubr.bf16.mxu0 0
        %651 = vmatmul.mubr.bf16.gmra.mrb[0].mxu0 %v613
        %v652 = vpop.f32.mrb[0].mxu0
        %v653 = vadd.f32 0.0, %v652
        %v654 = vpop.f32.mrb[0].mxu0
        %v655 = vpop.f32.mrb[0].mxu0
        %v656 = vpop.f32.mrb[0].mxu0
        %657 = vdwg.mxu0
        %658 = vrot.lane.b32.xlu0 %v320, 96
        %v659 = vpop.permute.xlu0 %658
        %v661 = vsel %vm323, %v320, 0
        %v664 = vsel %vm323, %v659, 0
        %666 = vmatprep.subr.bf16.mxu0 0
        %667 = vmatpush1.bf16.xpose.msra.mxu0 %v664
        %668 = vmatprep.subr.bf16.mxu0 0
        %669 = vmatpush1.bf16.xpose.msra.mxu0 0
        %670 = vmatprep.subr.bf16.mxu0 0
        %671 = vmatpush1.bf16.xpose.msra.mxu0 0
        %672 = vmatprep.subr.bf16.mxu0 0
        %673 = vmatpush1.bf16.xpose.msra.mxu0 0
        %674 = vmatprep.subr.bf16.mxu0 0
        %675 = vmatpush1.bf16.xpose.msra.mxu0 0
        %676 = vmatprep.subr.bf16.mxu0 0
        %677 = vmatpush1.bf16.xpose.msra.mxu0 0
        %678 = vmatprep.subr.bf16.mxu0 0
        %679 = vmatpush1.bf16.xpose.msra.mxu0 0
        %680 = vmatprep.subr.bf16.mxu0 0
        %681 = vmatpush1.bf16.xpose.msra.mxu0 0
        %682 = vmatprep.subr.bf16.mxu0 0
        %683 = vmatpush1.bf16.xpose.msra.mxu0 0
        %684 = vmatprep.subr.bf16.mxu0 0
        %685 = vmatpush1.bf16.xpose.msra.mxu0 0
        %686 = vmatprep.subr.bf16.mxu0 0
        %687 = vmatpush1.bf16.xpose.msra.mxu0 0
        %688 = vmatprep.subr.bf16.mxu0 0
        %689 = vmatpush1.bf16.xpose.msra.mxu0 0
        %690 = vmatprep.subr.bf16.mxu0 0
        %691 = vmatpush1.bf16.xpose.msra.mxu0 0
        %692 = vmatprep.subr.bf16.mxu0 0
        %693 = vmatpush1.bf16.xpose.msra.mxu0 0
        %694 = vmatprep.subr.bf16.mxu0 0
        %695 = vmatpush1.bf16.xpose.msra.mxu0 0
        %696 = vmatprep.subr.bf16.mxu0 0
        %697 = vmatpush1.bf16.xpose.msra.mxu0 0
        %698 = vmatprep.mubr.bf16.mxu0 0
        %699 = vmatmul.mubr.bf16.gmra.mrb[0].mxu0 %v661
        %v700 = vpop.f32.mrb[0].mxu0
        %v701 = vadd.f32 0.0, %v700
        %v702 = vpop.f32.mrb[0].mxu0
        %v703 = vpop.f32.mrb[0].mxu0
        %v704 = vpop.f32.mrb[0].mxu0
        %705 = vdwg.mxu0
        %vm706 = vcmask 64512
        %v707 = vsel %vm706, %v365, -inf
        %708 = vmax.xlane.f32.xlu0 %v707
        %v709 = vpop.xlane.xlu0 %708
        %v710 = vsel %vm706, %v413, -inf
        %711 = vmax.xlane.f32.xlu0 %v710
        %v712 = vpop.xlane.xlu0 %711
        %v713 = vsel %vm706, %v461, -inf
        %714 = vmax.xlane.f32.xlu0 %v713
        %v715 = vpop.xlane.xlu0 %714
        %v716 = vsel %vm706, %v509, -inf
        %717 = vmax.xlane.f32.xlu0 %v716
        %v718 = vpop.xlane.xlu0 %717
        %v719 = vsel %vm706, %v557, -inf
        %720 = vmax.xlane.f32.xlu0 %v719
        %v721 = vpop.xlane.xlu0 %720
        %v722 = vsel %vm706, %v605, -inf
        %723 = vmax.xlane.f32.xlu0 %v722
        %v724 = vpop.xlane.xlu0 %723
        %v725 = vsel %vm706, %v653, -inf
        %726 = vmax.xlane.f32.xlu0 %v725
        %v727 = vpop.xlane.xlu0 %726
        %v728 = vsel %vm706, %v701, -inf
        %729 = vmax.xlane.f32.xlu0 %v728
        %v730 = vpop.xlane.xlu0 %729
        %v731 = vsub.f32 %v365, %v709
        %v732 = vsub.f32 %v413, %v712
        %v733 = vsub.f32 %v461, %v715
        %v734 = vsub.f32 %v509, %v718
        %v735 = vsub.f32 %v557, %v721
        %v736 = vsub.f32 %v605, %v724
        %v737 = vsub.f32 %v653, %v727
        %v738 = vsub.f32 %v701, %v730
        %v739 = vmul.f32 %v731, 1.442695
        %v740 = vpow.pop %v739
        %v741 = vmul.f32 %v732, 1.442695
        %v742 = vpow.pop %v741
        %v743 = vmul.f32 %v733, 1.442695
        %v744 = vpow.pop %v743
        %v745 = vmul.f32 %v734, 1.442695
        %v746 = vpow.pop %v745
        %v747 = vmul.f32 %v735, 1.442695
        %v748 = vpow.pop %v747
        %v749 = vmul.f32 %v736, 1.442695
        %v750 = vpow.pop %v749
        %v751 = vmul.f32 %v737, 1.442695
        %v752 = vpow.pop %v751
        %v753 = vmul.f32 %v738, 1.442695
        %v754 = vpow.pop %v753
        %v755 = vsel %vm706, %v740, 0.0
        %756 = vadd.xlane.f32.xlu0 %v755
        %v757 = vpop.xlane.xlu0 %756
        %v758 = vsel %vm706, %v742, 0.0
        %759 = vadd.xlane.f32.xlu0 %v758
        %v760 = vpop.xlane.xlu0 %759
        %v761 = vsel %vm706, %v744, 0.0
        %762 = vadd.xlane.f32.xlu0 %v761
        %v763 = vpop.xlane.xlu0 %762
        %v764 = vsel %vm706, %v746, 0.0
        %765 = vadd.xlane.f32.xlu0 %v764
        %v766 = vpop.xlane.xlu0 %765
        %v767 = vsel %vm706, %v748, 0.0
        %768 = vadd.xlane.f32.xlu0 %v767
        %v769 = vpop.xlane.xlu0 %768
        %v770 = vsel %vm706, %v750, 0.0
        %771 = vadd.xlane.f32.xlu0 %v770
        %v772 = vpop.xlane.xlu0 %771
        %v773 = vsel %vm706, %v752, 0.0
        %774 = vadd.xlane.f32.xlu0 %v773
        %v775 = vpop.xlane.xlu0 %774
        %v776 = vsel %vm706, %v754, 0.0
        %777 = vadd.xlane.f32.xlu0 %v776
        %v778 = vpop.xlane.xlu0 %777
        %v779 = vrcp.pop %v757
        %v780 = vrcp.pop %v760
        %v781 = vrcp.pop %v763
        %v782 = vrcp.pop %v766
        %v783 = vrcp.pop %v769
        %v784 = vrcp.pop %v772
        %v785 = vrcp.pop %v775
        %v786 = vrcp.pop %v778
        %v787 = vmul.f32 %v740, %v779
        %v788 = vmul.f32 %v742, %v780
        %v789 = vmul.f32 %v744, %v781
        %v790 = vmul.f32 %v746, %v782
        %v791 = vmul.f32 %v748, %v783
        %v792 = vmul.f32 %v750, %v784
        %v793 = vmul.f32 %v752, %v785
        %v794 = vmul.f32 %v754, %v786
        %v795 = vpack.c.bf16 %v787, %v787
        %v796 = vpack.c.bf16 %v788, %v788
        %v797 = vpack.c.bf16 %v789, %v789
        %v798 = vpack.c.bf16 %v790, %v790
        %v799 = vpack.c.bf16 %v791, %v791
        %v800 = vpack.c.bf16 %v792, %v792
        %v801 = vpack.c.bf16 %v793, %v793
        %v802 = vpack.c.bf16 %v794, %v794
        %803 = vrot.lane.b32.xlu0 %v305, 64
        %v804 = vpop.permute.xlu0 %803
        %v806 = vsel %vm706, %v795, 0
        %vm808 = vcmask 1043456
        %v810 = vsel %vm808, %v804, 0
        %812 = vmatprep.subr.bf16.mxu0 0
        %813 = vmatpush1.bf16.msra.mxu0 %v810
        %814 = vmatprep.subr.bf16.mxu0 0
        %815 = vmatpush1.bf16.msra.mxu0 0
        %816 = vmatprep.subr.bf16.mxu0 0
        %817 = vmatpush1.bf16.msra.mxu0 0
        %818 = vmatprep.subr.bf16.mxu0 0
        %819 = vmatpush1.bf16.msra.mxu0 0
        %820 = vmatprep.subr.bf16.mxu0 0
        %821 = vmatpush1.bf16.msra.mxu0 0
        %822 = vmatprep.subr.bf16.mxu0 0
        %823 = vmatpush1.bf16.msra.mxu0 0
        %824 = vmatprep.subr.bf16.mxu0 0
        %825 = vmatpush1.bf16.msra.mxu0 0
        %826 = vmatprep.subr.bf16.mxu0 0
        %827 = vmatpush1.bf16.msra.mxu0 0
        %828 = vmatprep.subr.bf16.mxu0 0
        %829 = vmatpush1.bf16.msra.mxu0 0
        %830 = vmatprep.subr.bf16.mxu0 0
        %831 = vmatpush1.bf16.msra.mxu0 0
        %832 = vmatprep.subr.bf16.mxu0 0
        %833 = vmatpush1.bf16.msra.mxu0 0
        %834 = vmatprep.subr.bf16.mxu0 0
        %835 = vmatpush1.bf16.msra.mxu0 0
        %836 = vmatprep.subr.bf16.mxu0 0
        %837 = vmatpush1.bf16.msra.mxu0 0
        %838 = vmatprep.subr.bf16.mxu0 0
        %839 = vmatpush1.bf16.msra.mxu0 0
        %840 = vmatprep.subr.bf16.mxu0 0
        %841 = vmatpush1.bf16.msra.mxu0 0
        %842 = vmatprep.subr.bf16.mxu0 0
        %843 = vmatpush1.bf16.msra.mxu0 0
        %844 = vmatprep.mubr.bf16.mxu0 0
        %845 = vmatmul.mubr.bf16.gmra.mrb[0].mxu0 %v806
        %v846 = vpop.f32.mrb[0].mxu0
        %v847 = vadd.f32 0.0, %v846
        %v848 = vpop.f32.mrb[0].mxu0
        %v849 = vpop.f32.mrb[0].mxu0
        %v850 = vpop.f32.mrb[0].mxu0
        %851 = vdwg.mxu0
        %852 = vrot.lane.b32.xlu0 %v308, 64
        %v853 = vpop.permute.xlu0 %852
        %v855 = vsel %vm706, %v796, 0
        %v858 = vsel %vm808, %v853, 0
        %860 = vmatprep.subr.bf16.mxu0 0
        %861 = vmatpush1.bf16.msra.mxu0 %v858
        %862 = vmatprep.subr.bf16.mxu0 0
        %863 = vmatpush1.bf16.msra.mxu0 0
        %864 = vmatprep.subr.bf16.mxu0 0
        %865 = vmatpush1.bf16.msra.mxu0 0
        %866 = vmatprep.subr.bf16.mxu0 0
        %867 = vmatpush1.bf16.msra.mxu0 0
        %868 = vmatprep.subr.bf16.mxu0 0
        %869 = vmatpush1.bf16.msra.mxu0 0
        %870 = vmatprep.subr.bf16.mxu0 0
        %871 = vmatpush1.bf16.msra.mxu0 0
        %872 = vmatprep.subr.bf16.mxu0 0
        %873 = vmatpush1.bf16.msra.mxu0 0
        %874 = vmatprep.subr.bf16.mxu0 0
        %875 = vmatpush1.bf16.msra.mxu0 0
        %876 = vmatprep.subr.bf16.mxu0 0
        %877 = vmatpush1.bf16.msra.mxu0 0
        %878 = vmatprep.subr.bf16.mxu0 0
        %879 = vmatpush1.bf16.msra.mxu0 0
        %880 = vmatprep.subr.bf16.mxu0 0
        %881 = vmatpush1.bf16.msra.mxu0 0
        %882 = vmatprep.subr.bf16.mxu0 0
        %883 = vmatpush1.bf16.msra.mxu0 0
        %884 = vmatprep.subr.bf16.mxu0 0
        %885 = vmatpush1.bf16.msra.mxu0 0
        %886 = vmatprep.subr.bf16.mxu0 0
        %887 = vmatpush1.bf16.msra.mxu0 0
        %888 = vmatprep.subr.bf16.mxu0 0
        %889 = vmatpush1.bf16.msra.mxu0 0
        %890 = vmatprep.subr.bf16.mxu0 0
        %891 = vmatpush1.bf16.msra.mxu0 0
        %892 = vmatprep.mubr.bf16.mxu0 0
        %893 = vmatmul.mubr.bf16.gmra.mrb[0].mxu0 %v855
        %v894 = vpop.f32.mrb[0].mxu0
        %v895 = vadd.f32 0.0, %v894
        %v896 = vpop.f32.mrb[0].mxu0
        %v897 = vpop.f32.mrb[0].mxu0
        %v898 = vpop.f32.mrb[0].mxu0
        %899 = vdwg.mxu0
        %900 = vrot.lane.b32.xlu0 %v310, 64
        %v901 = vpop.permute.xlu0 %900
        %v903 = vsel %vm706, %v797, 0
        %v906 = vsel %vm808, %v901, 0
        %908 = vmatprep.subr.bf16.mxu0 0
        %909 = vmatpush1.bf16.msra.mxu0 %v906
        %910 = vmatprep.subr.bf16.mxu0 0
        %911 = vmatpush1.bf16.msra.mxu0 0
        %912 = vmatprep.subr.bf16.mxu0 0
        %913 = vmatpush1.bf16.msra.mxu0 0
        %914 = vmatprep.subr.bf16.mxu0 0
        %915 = vmatpush1.bf16.msra.mxu0 0
        %916 = vmatprep.subr.bf16.mxu0 0
        %917 = vmatpush1.bf16.msra.mxu0 0
        %918 = vmatprep.subr.bf16.mxu0 0
        %919 = vmatpush1.bf16.msra.mxu0 0
        %920 = vmatprep.subr.bf16.mxu0 0
        %921 = vmatpush1.bf16.msra.mxu0 0
        %922 = vmatprep.subr.bf16.mxu0 0
        %923 = vmatpush1.bf16.msra.mxu0 0
        %924 = vmatprep.subr.bf16.mxu0 0
        %925 = vmatpush1.bf16.msra.mxu0 0
        %926 = vmatprep.subr.bf16.mxu0 0
        %927 = vmatpush1.bf16.msra.mxu0 0
        %928 = vmatprep.subr.bf16.mxu0 0
        %929 = vmatpush1.bf16.msra.mxu0 0
        %930 = vmatprep.subr.bf16.mxu0 0
        %931 = vmatpush1.bf16.msra.mxu0 0
        %932 = vmatprep.subr.bf16.mxu0 0
        %933 = vmatpush1.bf16.msra.mxu0 0
        %934 = vmatprep.subr.bf16.mxu0 0
        %935 = vmatpush1.bf16.msra.mxu0 0
        %936 = vmatprep.subr.bf16.mxu0 0
        %937 = vmatpush1.bf16.msra.mxu0 0
        %938 = vmatprep.subr.bf16.mxu0 0
        %939 = vmatpush1.bf16.msra.mxu0 0
        %940 = vmatprep.mubr.bf16.mxu0 0
        %941 = vmatmul.mubr.bf16.gmra.mrb[0].mxu0 %v903
        %v942 = vpop.f32.mrb[0].mxu0
        %v943 = vadd.f32 0.0, %v942
        %v944 = vpop.f32.mrb[0].mxu0
        %v945 = vpop.f32.mrb[0].mxu0
        %v946 = vpop.f32.mrb[0].mxu0
        %947 = vdwg.mxu0
        %948 = vrot.lane.b32.xlu0 %v312, 64
        %v949 = vpop.permute.xlu0 %948
        %v951 = vsel %vm706, %v798, 0
        %v954 = vsel %vm808, %v949, 0
        %956 = vmatprep.subr.bf16.mxu0 0
        %957 = vmatpush1.bf16.msra.mxu0 %v954
        %958 = vmatprep.subr.bf16.mxu0 0
        %959 = vmatpush1.bf16.msra.mxu0 0
        %960 = vmatprep.subr.bf16.mxu0 0
        %961 = vmatpush1.bf16.msra.mxu0 0
        %962 = vmatprep.subr.bf16.mxu0 0
        %963 = vmatpush1.bf16.msra.mxu0 0
        %964 = vmatprep.subr.bf16.mxu0 0
        %965 = vmatpush1.bf16.msra.mxu0 0
        %966 = vmatprep.subr.bf16.mxu0 0
        %967 = vmatpush1.bf16.msra.mxu0 0
        %968 = vmatprep.subr.bf16.mxu0 0
        %969 = vmatpush1.bf16.msra.mxu0 0
        %970 = vmatprep.subr.bf16.mxu0 0
        %971 = vmatpush1.bf16.msra.mxu0 0
        %972 = vmatprep.subr.bf16.mxu0 0
        %973 = vmatpush1.bf16.msra.mxu0 0
        %974 = vmatprep.subr.bf16.mxu0 0
        %975 = vmatpush1.bf16.msra.mxu0 0
        %976 = vmatprep.subr.bf16.mxu0 0
        %977 = vmatpush1.bf16.msra.mxu0 0
        %978 = vmatprep.subr.bf16.mxu0 0
        %979 = vmatpush1.bf16.msra.mxu0 0
        %980 = vmatprep.subr.bf16.mxu0 0
        %981 = vmatpush1.bf16.msra.mxu0 0
        %982 = vmatprep.subr.bf16.mxu0 0
        %983 = vmatpush1.bf16.msra.mxu0 0
        %984 = vmatprep.subr.bf16.mxu0 0
        %985 = vmatpush1.bf16.msra.mxu0 0
        %986 = vmatprep.subr.bf16.mxu0 0
        %987 = vmatpush1.bf16.msra.mxu0 0
        %988 = vmatprep.mubr.bf16.mxu0 0
        %989 = vmatmul.mubr.bf16.gmra.mrb[0].mxu0 %v951
        %v990 = vpop.f32.mrb[0].mxu0
        %v991 = vadd.f32 0.0, %v990
        %v992 = vpop.f32.mrb[0].mxu0
        %v993 = vpop.f32.mrb[0].mxu0
        %v994 = vpop.f32.mrb[0].mxu0
        %995 = vdwg.mxu0
        %996 = vrot.lane.b32.xlu0 %v314, 64
        %v997 = vpop.permute.xlu0 %996
        %v999 = vsel %vm706, %v799, 0
        %v1002 = vsel %vm808, %v997, 0
        %1004 = vmatprep.subr.bf16.mxu0 0
        %1005 = vmatpush1.bf16.msra.mxu0 %v1002
        %1006 = vmatprep.subr.bf16.mxu0 0
        %1007 = vmatpush1.bf16.msra.mxu0 0
        %1008 = vmatprep.subr.bf16.mxu0 0
        %1009 = vmatpush1.bf16.msra.mxu0 0
        %1010 = vmatprep.subr.bf16.mxu0 0
        %1011 = vmatpush1.bf16.msra.mxu0 0
        %1012 = vmatprep.subr.bf16.mxu0 0
        %1013 = vmatpush1.bf16.msra.mxu0 0
        %1014 = vmatprep.subr.bf16.mxu0 0
        %1015 = vmatpush1.bf16.msra.mxu0 0
        %1016 = vmatprep.subr.bf16.mxu0 0
        %1017 = vmatpush1.bf16.msra.mxu0 0
        %1018 = vmatprep.subr.bf16.mxu0 0
        %1019 = vmatpush1.bf16.msra.mxu0 0
        %1020 = vmatprep.subr.bf16.mxu0 0
        %1021 = vmatpush1.bf16.msra.mxu0 0
        %1022 = vmatprep.subr.bf16.mxu0 0
        %1023 = vmatpush1.bf16.msra.mxu0 0
        %1024 = vmatprep.subr.bf16.mxu0 0
        %1025 = vmatpush1.bf16.msra.mxu0 0
        %1026 = vmatprep.subr.bf16.mxu0 0
        %1027 = vmatpush1.bf16.msra.mxu0 0
        %1028 = vmatprep.subr.bf16.mxu0 0
        %1029 = vmatpush1.bf16.msra.mxu0 0
        %1030 = vmatprep.subr.bf16.mxu0 0
        %1031 = vmatpush1.bf16.msra.mxu0 0
        %1032 = vmatprep.subr.bf16.mxu0 0
        %1033 = vmatpush1.bf16.msra.mxu0 0
        %1034 = vmatprep.subr.bf16.mxu0 0
        %1035 = vmatpush1.bf16.msra.mxu0 0
        %1036 = vmatprep.mubr.bf16.mxu0 0
        %1037 = vmatmul.mubr.bf16.gmra.mrb[0].mxu0 %v999
        %v1038 = vpop.f32.mrb[0].mxu0
        %v1039 = vadd.f32 0.0, %v1038
        %v1040 = vpop.f32.mrb[0].mxu0
        %v1041 = vpop.f32.mrb[0].mxu0
        %v1042 = vpop.f32.mrb[0].mxu0
        %1043 = vdwg.mxu0
        %1044 = vrot.lane.b32.xlu0 %v316, 64
        %v1045 = vpop.permute.xlu0 %1044
        %v1047 = vsel %vm706, %v800, 0
        %v1050 = vsel %vm808, %v1045, 0
        %1052 = vmatprep.subr.bf16.mxu0 0
        %1053 = vmatpush1.bf16.msra.mxu0 %v1050
        %1054 = vmatprep.subr.bf16.mxu0 0
        %1055 = vmatpush1.bf16.msra.mxu0 0
        %1056 = vmatprep.subr.bf16.mxu0 0
        %1057 = vmatpush1.bf16.msra.mxu0 0
        %1058 = vmatprep.subr.bf16.mxu0 0
        %1059 = vmatpush1.bf16.msra.mxu0 0
        %1060 = vmatprep.subr.bf16.mxu0 0
        %1061 = vmatpush1.bf16.msra.mxu0 0
        %1062 = vmatprep.subr.bf16.mxu0 0
        %1063 = vmatpush1.bf16.msra.mxu0 0
        %1064 = vmatprep.subr.bf16.mxu0 0
        %1065 = vmatpush1.bf16.msra.mxu0 0
        %1066 = vmatprep.subr.bf16.mxu0 0
        %1067 = vmatpush1.bf16.msra.mxu0 0
        %1068 = vmatprep.subr.bf16.mxu0 0
        %1069 = vmatpush1.bf16.msra.mxu0 0
        %1070 = vmatprep.subr.bf16.mxu0 0
        %1071 = vmatpush1.bf16.msra.mxu0 0
        %1072 = vmatprep.subr.bf16.mxu0 0
        %1073 = vmatpush1.bf16.msra.mxu0 0
        %1074 = vmatprep.subr.bf16.mxu0 0
        %1075 = vmatpush1.bf16.msra.mxu0 0
        %1076 = vmatprep.subr.bf16.mxu0 0
        %1077 = vmatpush1.bf16.msra.mxu0 0
        %1078 = vmatprep.subr.bf16.mxu0 0
        %1079 = vmatpush1.bf16.msra.mxu0 0
        %1080 = vmatprep.subr.bf16.mxu0 0
        %1081 = vmatpush1.bf16.msra.mxu0 0
        %1082 = vmatprep.subr.bf16.mxu0 0
        %1083 = vmatpush1.bf16.msra.mxu0 0
        %1084 = vmatprep.mubr.bf16.mxu0 0
        %1085 = vmatmul.mubr.bf16.gmra.mrb[0].mxu0 %v1047
        %v1086 = vpop.f32.mrb[0].mxu0
        %v1087 = vadd.f32 0.0, %v1086
        %v1088 = vpop.f32.mrb[0].mxu0
        %v1089 = vpop.f32.mrb[0].mxu0
        %v1090 = vpop.f32.mrb[0].mxu0
        %1091 = vdwg.mxu0
        %1092 = vrot.lane.b32.xlu0 %v318, 64
        %v1093 = vpop.permute.xlu0 %1092
        %v1095 = vsel %vm706, %v801, 0
        %v1098 = vsel %vm808, %v1093, 0
        %1100 = vmatprep.subr.bf16.mxu0 0
        %1101 = vmatpush1.bf16.msra.mxu0 %v1098
        %1102 = vmatprep.subr.bf16.mxu0 0
        %1103 = vmatpush1.bf16.msra.mxu0 0
        %1104 = vmatprep.subr.bf16.mxu0 0
        %1105 = vmatpush1.bf16.msra.mxu0 0
        %1106 = vmatprep.subr.bf16.mxu0 0
        %1107 = vmatpush1.bf16.msra.mxu0 0
        %1108 = vmatprep.subr.bf16.mxu0 0
        %1109 = vmatpush1.bf16.msra.mxu0 0
        %1110 = vmatprep.subr.bf16.mxu0 0
        %1111 = vmatpush1.bf16.msra.mxu0 0
        %1112 = vmatprep.subr.bf16.mxu0 0
        %1113 = vmatpush1.bf16.msra.mxu0 0
        %1114 = vmatprep.subr.bf16.mxu0 0
        %1115 = vmatpush1.bf16.msra.mxu0 0
        %1116 = vmatprep.subr.bf16.mxu0 0
        %1117 = vmatpush1.bf16.msra.mxu0 0
        %1118 = vmatprep.subr.bf16.mxu0 0
        %1119 = vmatpush1.bf16.msra.mxu0 0
        %1120 = vmatprep.subr.bf16.mxu0 0
        %1121 = vmatpush1.bf16.msra.mxu0 0
        %1122 = vmatprep.subr.bf16.mxu0 0
        %1123 = vmatpush1.bf16.msra.mxu0 0
        %1124 = vmatprep.subr.bf16.mxu0 0
        %1125 = vmatpush1.bf16.msra.mxu0 0
        %1126 = vmatprep.subr.bf16.mxu0 0
        %1127 = vmatpush1.bf16.msra.mxu0 0
        %1128 = vmatprep.subr.bf16.mxu0 0
        %1129 = vmatpush1.bf16.msra.mxu0 0
        %1130 = vmatprep.subr.bf16.mxu0 0
        %1131 = vmatpush1.bf16.msra.mxu0 0
        %1132 = vmatprep.mubr.bf16.mxu0 0
        %1133 = vmatmul.mubr.bf16.gmra.mrb[0].mxu0 %v1095
        %v1134 = vpop.f32.mrb[0].mxu0
        %v1135 = vadd.f32 0.0, %v1134
        %v1136 = vpop.f32.mrb[0].mxu0
        %v1137 = vpop.f32.mrb[0].mxu0
        %v1138 = vpop.f32.mrb[0].mxu0
        %1139 = vdwg.mxu0
        %1140 = vrot.lane.b32.xlu0 %v320, 64
        %v1141 = vpop.permute.xlu0 %1140
        %v1143 = vsel %vm706, %v802, 0
        %v1146 = vsel %vm808, %v1141, 0
        %1148 = vmatprep.subr.bf16.mxu0 0
        %1149 = vmatpush1.bf16.msra.mxu0 %v1146
        %1150 = vmatprep.subr.bf16.mxu0 0
        %1151 = vmatpush1.bf16.msra.mxu0 0
        %1152 = vmatprep.subr.bf16.mxu0 0
        %1153 = vmatpush1.bf16.msra.mxu0 0
        %1154 = vmatprep.subr.bf16.mxu0 0
        %1155 = vmatpush1.bf16.msra.mxu0 0
        %1156 = vmatprep.subr.bf16.mxu0 0
        %1157 = vmatpush1.bf16.msra.mxu0 0
        %1158 = vmatprep.subr.bf16.mxu0 0
        %1159 = vmatpush1.bf16.msra.mxu0 0
        %1160 = vmatprep.subr.bf16.mxu0 0
        %1161 = vmatpush1.bf16.msra.mxu0 0
        %1162 = vmatprep.subr.bf16.mxu0 0
        %1163 = vmatpush1.bf16.msra.mxu0 0
        %1164 = vmatprep.subr.bf16.mxu0 0
        %1165 = vmatpush1.bf16.msra.mxu0 0
        %1166 = vmatprep.subr.bf16.mxu0 0
        %1167 = vmatpush1.bf16.msra.mxu0 0
        %1168 = vmatprep.subr.bf16.mxu0 0
        %1169 = vmatpush1.bf16.msra.mxu0 0
        %1170 = vmatprep.subr.bf16.mxu0 0
        %1171 = vmatpush1.bf16.msra.mxu0 0
        %1172 = vmatprep.subr.bf16.mxu0 0
        %1173 = vmatpush1.bf16.msra.mxu0 0
        %1174 = vmatprep.subr.bf16.mxu0 0
        %1175 = vmatpush1.bf16.msra.mxu0 0
        %1176 = vmatprep.subr.bf16.mxu0 0
        %1177 = vmatpush1.bf16.msra.mxu0 0
        %1178 = vmatprep.subr.bf16.mxu0 0
        %1179 = vmatpush1.bf16.msra.mxu0 0
        %1180 = vmatprep.mubr.bf16.mxu0 0
        %1181 = vmatmul.mubr.bf16.gmra.mrb[0].mxu0 %v1143
        %v1182 = vpop.f32.mrb[0].mxu0
        %v1183 = vadd.f32 0.0, %v1182
        %v1184 = vpop.f32.mrb[0].mxu0
        %v1185 = vpop.f32.mrb[0].mxu0
        %v1186 = vpop.f32.mrb[0].mxu0
        %1187 = vdwg.mxu0
        %1189 = vrot.lane.b32.xlu0 %v895, 4
        %v1190 = vpop.permute.xlu0 %1189
        %1193 = vrot.lane.b32.xlu0 %v943, 8
        %v1194 = vpop.permute.xlu0 %1193
        %1197 = vrot.lane.b32.xlu0 %v991, 12
        %v1198 = vpop.permute.xlu0 %1197
        %1201 = vrot.lane.b32.xlu0 %v1039, 16
        %v1202 = vpop.permute.xlu0 %1201
        %1205 = vrot.lane.b32.xlu0 %v1087, 20
        %v1206 = vpop.permute.xlu0 %1205
        %1209 = vrot.lane.b32.xlu0 %v1135, 24
        %v1210 = vpop.permute.xlu0 %1209
        %1213 = vrot.lane.b32.xlu0 %v1183, 28
        %v1214 = vpop.permute.xlu0 %1213
        %v1216 = vsel %vm323, %v847, %v1190
        %v1217 = vsel %vm706, %v1216, %v1194
        %vm1218 = vcmask 97280
        %v1219 = vsel %vm1218, %v1217, %v1198
        %vm1220 = vcmask 130048
        %v1221 = vsel %vm1220, %v1219, %v1202
        %vm1222 = vcmask 162816
        %v1223 = vsel %vm1222, %v1221, %v1206
        %vm1224 = vcmask 195584
        %v1225 = vsel %vm1224, %v1223, %v1210
        %vm1226 = vcmask 228352
        %v1227 = vsel %vm1226, %v1225, %v1214
        %v1228 = vpack.c.bf16 %v1227, %v1227
        %v1229 = vld [vmem:[#allocation7] sm:$0xf]
        %v1230 = vld [vmem:[#allocation7 + $0x4] sm:$0xf]
        %v1231 = vld [vmem:[#allocation7 + $0x8] sm:$0xf]
        %v1232 = vld [vmem:[#allocation7 + $0xc] sm:$0xf]
        %v1233 = vld [vmem:[%s3] sm:$0x1]
        %v1235 = vlaneseq
        %v1236 = vshrl.u32 %v1235, 7
        %v1237 = vsub.s32 0, %v1236
        %v1238 = vrot.slane %v1233, %v1237
        %v1244 = vunpack.c.l.b16 %v1229
        %v1245 = vunpack.c.l.b16 %v1230
        %v1246 = vunpack.c.l.b16 %v1231
        %v1247 = vunpack.c.l.b16 %v1232
        %v1248 = vpack.c.b16 %v1245, %v1244
        %v1249 = vpack.c.b16 %v1247, %v1246
        %v1253 = vsel %vm261, %v1228, 0
        %1255 = vmatprep.subr.bf16.mxu0 0
        %1256 = vmatpush1.bf16.msra.mxu0 %v1248
        %1257 = vmatprep.subr.bf16.mxu0 0
        %1258 = vmatpush1.bf16.msra.mxu0 %v1249
        %1259 = vmatprep.subr.bf16.mxu0 0
        %1260 = vmatpush1.bf16.msra.mxu0 0
        %1261 = vmatprep.subr.bf16.mxu0 0
        %1262 = vmatpush1.bf16.msra.mxu0 0
        %1263 = vmatprep.subr.bf16.mxu0 0
        %1264 = vmatpush1.bf16.msra.mxu0 0
        %1265 = vmatprep.subr.bf16.mxu0 0
        %1266 = vmatpush1.bf16.msra.mxu0 0
        %1267 = vmatprep.subr.bf16.mxu0 0
        %1268 = vmatpush1.bf16.msra.mxu0 0
        %1269 = vmatprep.subr.bf16.mxu0 0
        %1270 = vmatpush1.bf16.msra.mxu0 0
        %1271 = vmatprep.subr.bf16.mxu0 0
        %1272 = vmatpush1.bf16.msra.mxu0 0
        %1273 = vmatprep.subr.bf16.mxu0 0
        %1274 = vmatpush1.bf16.msra.mxu0 0
        %1275 = vmatprep.subr.bf16.mxu0 0
        %1276 = vmatpush1.bf16.msra.mxu0 0
        %1277 = vmatprep.subr.bf16.mxu0 0
        %1278 = vmatpush1.bf16.msra.mxu0 0
        %1279 = vmatprep.subr.bf16.mxu0 0
        %1280 = vmatpush1.bf16.msra.mxu0 0
        %1281 = vmatprep.subr.bf16.mxu0 0
        %1282 = vmatpush1.bf16.msra.mxu0 0
        %1283 = vmatprep.subr.bf16.mxu0 0
        %1284 = vmatpush1.bf16.msra.mxu0 0
        %1285 = vmatprep.subr.bf16.mxu0 0
        %1286 = vmatpush1.bf16.msra.mxu0 0
        %1287 = vmatprep.mubr.bf16.mxu0 0
        %1288 = vmatmul.mubr.bf16.gmra.mrb[0].mxu0 %v1253
        %v1289 = vpop.f32.mrb[0].mxu0
        %v1290 = vadd.f32 %v1238, %v1289
        %v1291 = vpop.f32.mrb[0].mxu0
        %v1292 = vpop.f32.mrb[0].mxu0
        %v1293 = vpop.f32.mrb[0].mxu0
        %1294 = vdwg.mxu0
        %v1296 = vrot.slane %v1290, 1
        %1297 = vrot.lane.b32.xlu0 %v1296, 32
        %v1298 = vpop.permute.xlu0 %1297
        %v1300 = vrot.slane %v1290, 2
        %1301 = vrot.lane.b32.xlu0 %v1300, 64
        %v1302 = vpop.permute.xlu0 %1301
        %v1304 = vrot.slane %v1290, 3
        %1305 = vrot.lane.b32.xlu0 %v1304, 96
        %v1306 = vpop.permute.xlu0 %1305
        %v1308 = vrot.slane %v1290, 4
        %v1310 = vrot.slane %v1290, 5
        %1311 = vrot.lane.b32.xlu0 %v1310, 32
        %v1312 = vpop.permute.xlu0 %1311
        %v1314 = vrot.slane %v1290, 6
        %1315 = vrot.lane.b32.xlu0 %v1314, 64
        %v1316 = vpop.permute.xlu0 %1315
        %v1318 = vrot.slane %v1290, 7
        %1319 = vrot.lane.b32.xlu0 %v1318, 96
        %v1320 = vpop.permute.xlu0 %1319
        %v1322 = vsel %vm261, %v1290, %v1298
        %vm1323 = vcmask 523264
        %v1324 = vsel %vm1323, %v1322, %v1302
        %vm1325 = vcmask 785408
        %v1326 = vsel %vm1325, %v1324, %v1306
        %v1327 = vsel %vm261, %v1308, %v1312
        %v1328 = vsel %vm1323, %v1327, %v1316
        %v1329 = vsel %vm1325, %v1328, %v1320
        %v1332 = vcombine.low %v1326, %v1329
        %v1334 = vunpack.c.l.s4 1966171168
        %v1335 = vunpack.c.0.s8 %v1334
        %v1336 = vlaneseq
        %v1337 = vshrl.u32 %v1336, 7
        %v1338 = vsub.s32 %v1335, %v1337
        %v1339 = vrot.slane %v1332, %v1338
        %v1341 = vunpack.c.l.s4 1966171168
        %v1342 = vunpack.c.0.s8 %v1341
        %v1343 = vlaneseq
        %v1344 = vshrl.u32 %v1343, 7
        %v1345 = vsub.s32 %v1342, %v1344
        %v1346 = vrot.slane %v1339, %v1345
        %v1348 = vlaneseq
        %vm1349 = vcmp.ge.s32.totalorder %v1348, 0
        %vm1350 = vcmp.lt.s32.totalorder %v1348, 256
        %vm1351 = vmand %vm1349, %vm1350
        %1352 = vst.msk [vmem:[%s241] sm:$0x3] %vm1351, %v1346
        %s1353 = sand.u32 %s119, 1
        %s1354 = scalar_lea.sflag [#allocation4], %s1353
        %s1355 = sand.u32 %s119, 1
        %s1356 = smul.addr %s1355, 2
        %s1357 = scalar_lea.vmem [#allocation8], %s1356
        // Predicated region
        $region49: #{tpu_custom_call.1} parent=35 // pred_check
          %p1358 = pneg %p129
        $region50: #{tpu_custom_call.1} parent=35 // pred_check_branch
          %1360 = sbr.rel (%p1358) target = $region52
        $region51: #{tpu_custom_call.1} parent=35 // pred_region
          %s1362 = ssub.s32 32, 32
          %1363 = vsyncadd %s1354, %s1362
          %s1364 = smul.addr %s22, 2
          %s1365 = smul.addr %s1364, 16
          %s1366 = scalar_lea.hbm %s4, %s1365
          %s1368 = sshll.u32 %s1357, 4
          %s1369 = int_to_ptr.vmem [resolvable:$true] %s1368
          %1371 = dma.vmem_to_hbm [thread:$0]  %s1369, 32, %s1366, %s1354
        $region52: #{tpu_custom_call.1} parent=35 // pred_fallthru
          _
      $region36: #{tpu_custom_call.1} parent=5 // pred_fallthru
        _
      %p1372 = scmp.le.s32.totalorder 2, %s17
      // Predicated region
      $region53: #{tpu_custom_call.1} parent=5 // pred_check
        %p1373 = pneg %p1372
      $region54: #{tpu_custom_call.1} parent=5 // pred_check_branch
        %1375 = sbr.rel (%p1373) target = $region56
      $region55: #{tpu_custom_call.1} parent=5 // pred_region
        %s1376 = ssub.s32 %s17, 2
        // Predicated region
        $region57: #{tpu_custom_call.1} parent=55 // pred_check
          %p1377 = pneg %p135
        $region58: #{tpu_custom_call.1} parent=55 // pred_check_branch
          %1379 = sbr.rel (%p1377) target = $region60
        $region59: #{tpu_custom_call.1} parent=55 // pred_region
          %s1380 = sand.u32 %s120, 1
          %s1381 = scalar_lea.sflag [#allocation4], %s1380
          %s1382 = sand.u32 %s120, 1
          %s1383 = smul.addr %s1382, 2
          %s1384 = scalar_lea.vmem [#allocation8], %s1383
          %1385 = dma.done %s1381, 32
        $region60: #{tpu_custom_call.1} parent=55 // pred_fallthru
          _
      $region56: #{tpu_custom_call.1} parent=5 // pred_fallthru
        _
    $region6: #{tpu_custom_call.1} parent=1 // loop_footer
      %s21 = sadd.s32 1, %s17
    $region7: #{tpu_custom_call.1} parent=1 // loop_footer_branch
      %16 = sbr.rel target = $region3
    $region8: #{tpu_custom_call.1} parent=1 // loop_exit
      _
    %1386 = vsyncpa [#allocation3], 1
    %s1387 = scalar_lea.sflag [#allocation3], 1
    %1388 = vsyncpa %s1387, 1
    %1389 = vsyncpa [#allocation6], 1
    %1390 = vsyncpa [#allocation4], 1
    %s1391 = scalar_lea.sflag [#allocation4], 1
    %1392 = vsyncpa %s1391, 1

</llo_original>
